<compile_context>
chip_gen: v5e
topology: v5e:2x2
jax: 0.10.0
libtpu: 0.0.40
codegen_flags: <defaults>
</compile_context>

<pallas_src>
import functools

import jax
import jax.numpy as jnp
from jax import lax
from jax.experimental import pallas as pl
from jax.experimental.pallas import tpu as pltpu


def _round_up(x, m):
    return (x + m - 1) // m * m


def _vmem_capacity_bytes():
    try:
        return int(pltpu.get_tpu_info().vmem_capacity_bytes)
    except Exception:
        return 64 * 1024 * 1024          # conservative (v7x per-core VMEM)


# ---------------------------------------------------------------------------
# Kernel 1: per-edge messages.  grid = (edge_tiles,)
# ---------------------------------------------------------------------------
def message_kernel(feat_ref, src_ref, rel_ref, att_ref, w_msg_ref, m_bias_ref,
                   msg_ref, *, num_rels):
    """
    feat_ref  : [Np, IN]      bf16  full node features (resident)
    src_ref   : [TE, 1]       int32 source node id per edge
    rel_ref   : [TE, 1]       int32 relation id per edge
    att_ref   : [TE, 1]       f32   per-edge attention
    w_msg_ref : [IN, R*OUTp]  bf16  concatenated per-relation weights
    m_bias_ref: [R, OUTp]     f32   per-relation message bias
    msg_ref   : [TE, OUTp]    bf16  out: attention * (feat[src] @ W_rel + m_bias)
    """
    TE = src_ref.shape[0]
    Np = feat_ref.shape[0]
    OUTp = msg_ref.shape[1]
    f32, bf16 = jnp.float32, jnp.bfloat16

    # Gather source rows with an exact one-hot matmul on the MXU.
    src = src_ref[...]                                              # [TE, 1]
    node_iota = lax.broadcasted_iota(jnp.int32, (TE, Np), 1)
    onehot_src = (src == node_iota).astype(bf16)                    # exact 0/1
    src_h = jnp.dot(onehot_src, feat_ref[...],
                    preferred_element_type=f32).astype(bf16)        # [TE, IN]

    # All relations in one wide MXU matmul, then per-relation select + bias.
    msg_all = jnp.dot(src_h, w_msg_ref[...],
                      preferred_element_type=f32)                   # [TE, R*OUTp]
    rel = rel_ref[...]                                              # [TE, 1]
    raw = jnp.zeros((TE, OUTp), f32)
    for r in range(num_rels):                                       # static, small
        raw += jnp.where(rel == r,
                         msg_all[:, r * OUTp:(r + 1) * OUTp]
                         + m_bias_ref[r:r + 1, :], 0.0)

    # Attention applied in f32; only the final message is rounded to bf16.
    msg_ref[...] = (att_ref[...] * raw).astype(msg_ref.dtype)


# ---------------------------------------------------------------------------
# Kernel 2: self-loop + scatter-add.  grid = (node_tiles, edge_tiles)
# ---------------------------------------------------------------------------
def aggregate_kernel(feat_ref, ntype_ref, dst_ref, msg_ref, w_loop_ref,
                     h_bias_ref, out_ref, *, num_ntypes):
    """
    feat_ref  : [TN, IN]      bf16  node-tile features
    ntype_ref : [TN, 1]       int32 node type
    dst_ref   : [1, TE]       int32 destination node id (lane-dense; pad = -1)
    msg_ref   : [TE, OUTp]    bf16  per-edge messages from kernel 1
    w_loop_ref: [IN, T*OUTp]  bf16  concatenated per-ntype self-loop weights
    h_bias_ref: [T, OUTp]     f32   per-ntype self-loop bias
    out_ref   : [TN, OUTp]    f32   accumulated across the edge-tile axis
    """
    n_i = pl.program_id(0)
    e_j = pl.program_id(1)
    TN, OUTp = out_ref.shape
    TE = msg_ref.shape[0]
    f32, bf16 = jnp.float32, jnp.bfloat16

    # First edge tile: self-loop term initializes the resident accumulator.
    @pl.when(e_j == 0)
    def _init():
        loop_all = jnp.dot(feat_ref[...], w_loop_ref[...],
                           preferred_element_type=f32)              # [TN, T*OUTp]
        nt = ntype_ref[...]                                         # [TN, 1]
        loop_val = jnp.zeros((TN, OUTp), f32)
        for t in range(num_ntypes):                                 # static, small
            loop_val += jnp.where(nt == t,
                                  loop_all[:, t * OUTp:(t + 1) * OUTp]
                                  + h_bias_ref[t:t + 1, :], 0.0)
        out_ref[...] = loop_val

    # Scatter-add: exact 0/1 one-hot [TN, TE] times bf16 messages.
    dst_local = dst_ref[...] - n_i * TN                             # [1, TE]
    row_iota = lax.broadcasted_iota(jnp.int32, (TN, TE), 0)         # grid-invariant
    scat = (dst_local == row_iota).astype(bf16)                     # [TN, TE]
    out_ref[...] += jnp.dot(scat, msg_ref[...], preferred_element_type=f32)


# ---------------------------------------------------------------------------
# Wrapper
# ---------------------------------------------------------------------------
def fam_gnn_forward(feat, src, dst, etypes, ntypes, attention,
                    weight, m_bias, loop_weight, h_bias,
                    *, node_tile=None, edge_tile=None):
    """feat: [N, in_feat]; src/dst/etypes: [E]; ntypes: [N]; attention: [E,1,1].
    Returns h: [N, 1, out_feat] (matches the PyTorch 2-D input branch)."""
    N, in_feat = feat.shape
    E = src.shape[0]
    num_rels, _, out_feat = weight.shape
    num_ntypes = loop_weight.shape[0]

    f32, i32, bf16 = jnp.float32, jnp.int32, jnp.bfloat16
    OUTp = _round_up(max(out_feat, 128), 128)     # lane-dense stores / MXU columns

    # Generation-aware VMEM budget & default tile sizes.
    vmem_cap = _vmem_capacity_bytes()
    vmem_limit = min(int(vmem_cap * 0.75), 96 * 1024 * 1024)
    big_vmem = vmem_cap >= 100 * 1024 * 1024      # v5e/v6e (128 MiB) vs v7x (64 MiB)
    if node_tile is None:
        node_tile = 512 if big_vmem else 256
    if edge_tile is None:
        edge_tile = 512 if big_vmem else 256
    assert node_tile % 8 == 0 and edge_tile % 128 == 0

    Np = _round_up(N, 8)
    TN = Np if Np <= node_tile else node_tile
    Np = _round_up(Np, TN)
    Ep = _round_up(E, 128)
    TE = Ep if Ep <= edge_tile else edge_tile
    Ep = _round_up(Ep, TE)
    n_tiles, e_tiles = Np // TN, Ep // TE

    # Padded node features (no bias column -> 128-lane alignment preserved).
    feat_p = jnp.zeros((Np, in_feat), f32).at[:N].set(feat.astype(f32))

    # Per-edge / per-node metadata.
    src_p = jnp.zeros((Ep, 1), i32).at[:E, 0].set(src.astype(i32))
    rel_p = jnp.zeros((Ep, 1), i32).at[:E, 0].set(etypes.astype(i32))
    att_p = jnp.zeros((Ep, 1), f32).at[:E, 0].set(attention.reshape(E).astype(f32))
    dst_p = jnp.full((1, Ep), -1, i32).at[0, :E].set(dst.astype(i32))   # pad: no match
    ntype_p = jnp.zeros((Np, 1), i32).at[:N, 0].set(ntypes.astype(i32))

    # Fused weights [IN, R*OUTp] / [IN, T*OUTp] (out dim zero-padded to OUTp).
    w_msg = jnp.zeros((num_rels, in_feat, OUTp), f32)
    w_msg = w_msg.at[..., :out_feat].set(weight.astype(f32))
    w_msg = jnp.transpose(w_msg, (1, 0, 2)).reshape(in_feat, num_rels * OUTp)
    w_loop = jnp.zeros((num_ntypes, in_feat, OUTp), f32)
    w_loop = w_loop.at[..., :out_feat].set(loop_weight.astype(f32))
    w_loop = jnp.transpose(w_loop, (1, 0, 2)).reshape(in_feat, num_ntypes * OUTp)
    m_bias_p = jnp.zeros((num_rels, OUTp), f32).at[:, :out_feat].set(m_bias.astype(f32))
    h_bias_p = jnp.zeros((num_ntypes, OUTp), f32).at[:, :out_feat].set(
        h_bias.reshape(num_ntypes, out_feat).astype(f32))

    # ---------------- kernel 1: per-edge messages over edge tiles ------------
    msg_flops = 2 * Ep * Np * in_feat + 2 * Ep * in_feat * num_rels * OUTp
    msg_bytes = (Np * in_feat * 2 + in_feat * num_rels * OUTp * 2
                 + Ep * 3 * 4 + Ep * OUTp * 2)
    msg = pl.pallas_call(
        functools.partial(message_kernel, num_rels=num_rels),
        out_shape=jax.ShapeDtypeStruct((Ep, OUTp), bf16),
        grid_spec=pltpu.PrefetchScalarGridSpec(
            num_scalar_prefetch=0,
            grid=(e_tiles,),
            in_specs=[
                pl.BlockSpec((Np, in_feat), lambda j: (0, 0)),        # feat (resident)
                pl.BlockSpec((TE, 1), lambda j: (j, 0)),              # src
                pl.BlockSpec((TE, 1), lambda j: (j, 0)),              # rel
                pl.BlockSpec((TE, 1), lambda j: (j, 0)),              # attention
                pl.BlockSpec((in_feat, num_rels * OUTp), lambda j: (0, 0)),
                pl.BlockSpec((num_rels, OUTp), lambda j: (0, 0)),
            ],
            out_specs=pl.BlockSpec((TE, OUTp), lambda j: (j, 0)),
        ),
        compiler_params=pltpu.CompilerParams(
            dimension_semantics=("parallel",),
            vmem_limit_bytes=vmem_limit,
        ),
        cost_estimate=pl.CostEstimate(flops=int(msg_flops), transcendentals=0,
                                      bytes_accessed=int(msg_bytes)),
    )(feat_p.astype(bf16), src_p, rel_p, att_p, w_msg.astype(bf16), m_bias_p)

    # -------- kernel 2: self-loop + scatter-add over (node, edge) tiles ------
    agg_flops = 2 * Np * Ep * OUTp + 2 * Np * in_feat * num_ntypes * OUTp
    agg_bytes = (Np * in_feat * 2 + in_feat * num_ntypes * OUTp * 2
                 + n_tiles * Ep * (OUTp * 2 + 4) + Np * OUTp * 4)
    out = pl.pallas_call(
        functools.partial(aggregate_kernel, num_ntypes=num_ntypes),
        out_shape=jax.ShapeDtypeStruct((Np, OUTp), f32),
        grid_spec=pltpu.PrefetchScalarGridSpec(
            num_scalar_prefetch=0,
            grid=(n_tiles, e_tiles),
            in_specs=[
                pl.BlockSpec((TN, in_feat), lambda i, j: (i, 0)),     # feat tile
                pl.BlockSpec((TN, 1), lambda i, j: (i, 0)),           # ntype
                pl.BlockSpec((1, TE), lambda i, j: (0, j)),           # dst (lane-dense)
                pl.BlockSpec((TE, OUTp), lambda i, j: (j, 0)),        # messages
                pl.BlockSpec((in_feat, num_ntypes * OUTp), lambda i, j: (0, 0)),
                pl.BlockSpec((num_ntypes, OUTp), lambda i, j: (0, 0)),
            ],
            out_specs=pl.BlockSpec((TN, OUTp), lambda i, j: (i, 0)),
        ),
        compiler_params=pltpu.CompilerParams(
            dimension_semantics=("parallel", "arbitrary"),
            vmem_limit_bytes=vmem_limit,
        ),
        cost_estimate=pl.CostEstimate(flops=int(agg_flops), transcendentals=0,
                                      bytes_accessed=int(agg_bytes)),
    )(feat_p.astype(bf16), ntype_p, dst_p, msg, w_loop.astype(bf16), h_bias_p)

    return out[:N, :out_feat].reshape(N, 1, out_feat)


# ---------------------------------------------------------------------------
# Pure-JAX f32 reference reproducing the PyTorch/DGL semantics.
# ---------------------------------------------------------------------------
def ref_forward(feat, src, dst, etypes, ntypes, attention,
                weight, m_bias, loop_weight, h_bias):
    N = feat.shape[0]
    out_feat = weight.shape[-1]
    x = feat[:, None, :]                                      # [N,1,in]
    loop_w = loop_weight[ntypes]                              # [N,in,out]
    loop_b = h_bias[ntypes]                                   # [N,1,out]
    loop_value = jnp.einsum('nij,njk->nik', x, loop_w) + loop_b

    w = weight[etypes]                                        # [E,in,out]
    mb = m_bias[etypes][:, None, :]                           # [E,1,out]
    src_h = feat[src][:, None, :]                             # [E,1,in]
    raw_msg = jnp.einsum('eij,ejk->eik', src_h, w) + mb
    msg = attention * raw_msg                                 # [E,1,out]

    agg = jnp.zeros((N, 1, out_feat), jnp.float32).at[dst].add(msg)
    return agg + loop_value


def xavier_uniform(key, shape, gain):
    # PyTorch fan calc for 3-D [n, in, out]: fan_in = in*out, fan_out = n*out.
    fan_in = shape[1] * shape[2]
    fan_out = shape[0] * shape[2]
    bound = gain * (6.0 / (fan_in + fan_out)) ** 0.5
    return jax.random.uniform(key, shape, jnp.float32, -bound, bound)


if __name__ == "__main__":
    # Small but multi-tile synthetic problem (exercises e_j>0 accumulation,
    # n_i>0 tiles, padded edges and padded nodes).
    N, E = 45, 300
    in_feat, out_feat = 32, 32
    num_rels, num_ntypes = 4, 3

    key = jax.random.PRNGKey(0)
    k = jax.random.split(key, 10)

    gain = 5.0 / 3.0  # nn.init.calculate_gain('tanh')
    weight = xavier_uniform(k[0], (num_rels, in_feat, out_feat), gain)
    loop_weight = xavier_uniform(k[1], (num_ntypes, in_feat, out_feat), gain)
    # The module zero-inits the biases; use small nonzero values so the bias
    # paths are actually exercised by the correctness check.
    m_bias = 0.1 * jax.random.normal(k[2], (num_rels, out_feat), jnp.float32)
    h_bias = 0.1 * jax.random.normal(k[3], (num_ntypes, 1, out_feat), jnp.float32)

    feat = jax.random.normal(k[4], (N, in_feat), jnp.float32)
    src = jax.random.randint(k[5], (E,), 0, N)
    dst = jax.random.randint(k[6], (E,), 0, N)
    etypes = jax.random.randint(k[7], (E,), 0, num_rels)
    ntypes = jax.random.randint(k[8], (N,), 0, num_ntypes)
    attention = jax.random.uniform(k[9], (E, 1, 1), jnp.float32)

    # Small tiles to force multiple node / edge tiles in the test.
    h = fam_gnn_forward(feat, src, dst, etypes, ntypes, attention,
                        weight, m_bias, loop_weight, h_bias,
                        node_tile=16, edge_tile=128)
    h = jax.block_until_ready(h)

    h_ref = ref_forward(feat, src, dst, etypes, ntypes, attention,
                        weight, m_bias, loop_weight, h_bias)

    assert h.shape == (N, 1, out_feat), h.shape
    # bf16 MXU operands (TPU-default matmul precision) with f32 accumulation.
    assert jnp.allclose(h, h_ref, atol=5e-2, rtol=5e-2), \
        float(jnp.max(jnp.abs(h - h_ref)))
    print("KERNEL_OK")
</pallas_src>

<mosaic_0001>
module attributes {stable_mosaic.version = 11 : i64} {
  func.func @message_kernel(%arg0: i32, %arg1: memref<48x32xbf16, #tpu.memory_space<vmem>>, %arg2: memref<128x1xi32, #tpu.memory_space<vmem>>, %arg3: memref<128x1xi32, #tpu.memory_space<vmem>>, %arg4: memref<128x1xf32, #tpu.memory_space<vmem>>, %arg5: memref<32x512xbf16, #tpu.memory_space<vmem>>, %arg6: memref<4x128xf32, #tpu.memory_space<vmem>>, %arg7: memref<128x128xbf16, #tpu.memory_space<vmem>>) attributes {dimension_semantics = [#tpu.dimension_semantics<parallel>], iteration_bounds = array<i64: 3>, scalar_prefetch = 0 : i64, scratch_operands = 0 : i64, tpu.core_type = #tpu.core_type<tc>, window_params = [{pipeline_mode = #tpu.pipeline_mode<synchronous>, transform_indices = @transform_0, window_bounds = array<i64: 48, 32>}, {transform_indices = @transform_1, window_bounds = array<i64: 128, 1>}, {transform_indices = @transform_2, window_bounds = array<i64: 128, 1>}, {transform_indices = @transform_3, window_bounds = array<i64: 128, 1>}, {pipeline_mode = #tpu.pipeline_mode<synchronous>, transform_indices = @transform_4, window_bounds = array<i64: 32, 512>}, {pipeline_mode = #tpu.pipeline_mode<synchronous>, transform_indices = @transform_5, window_bounds = array<i64: 4, 128>}, {transform_indices = @transform_6, window_bounds = array<i64: 128, 128>}]} {
    %c0 = arith.constant 0 : index
    %c0_0 = arith.constant 0 : index
    %0 = vector.load %arg2[%c0, %c0_0] : memref<128x1xi32, #tpu.memory_space<vmem>>, vector<128x1xi32>
    %1 = tpu.iota {dimensions = array<i32: 1>} : vector<128x48xi32>
    %2 = vector.broadcast %0 : vector<128x1xi32> to vector<128x48xi32>
    %3 = arith.cmpi eq, %2, %1 : vector<128x48xi32>
    %4 = arith.extui %3 : vector<128x48xi1> to vector<128x48xi32>
    %5 = arith.sitofp %4 : vector<128x48xi32> to vector<128x48xf32>
    %6 = arith.truncf %5 : vector<128x48xf32> to vector<128x48xbf16>
    %c0_1 = arith.constant 0 : index
    %c0_2 = arith.constant 0 : index
    %7 = vector.load %arg1[%c0_1, %c0_2] : memref<48x32xbf16, #tpu.memory_space<vmem>>, vector<48x32xbf16>
    %cst = arith.constant dense<0.000000e+00> : vector<128x32xf32>
    %8 = tpu.matmul %6, %7, %cst {dimension_numbers = #tpu.dot_dimension_numbers<[1], [0], [0], [1], [0, 0, 1, 1], [], []>} : vector<128x48xbf16>, vector<48x32xbf16>, vector<128x32xf32> -> vector<128x32xf32>
    %9 = arith.truncf %8 : vector<128x32xf32> to vector<128x32xbf16>
    %c0_3 = arith.constant 0 : index
    %c0_4 = arith.constant 0 : index
    %10 = vector.load %arg5[%c0_3, %c0_4] : memref<32x512xbf16, #tpu.memory_space<vmem>>, vector<32x512xbf16>
    %cst_5 = arith.constant dense<0.000000e+00> : vector<128x512xf32>
    %11 = tpu.matmul %9, %10, %cst_5 {dimension_numbers = #tpu.dot_dimension_numbers<[1], [0], [0], [1], [0, 0, 1, 1], [], []>} : vector<128x32xbf16>, vector<32x512xbf16>, vector<128x512xf32> -> vector<128x512xf32>
    %c0_6 = arith.constant 0 : index
    %c0_7 = arith.constant 0 : index
    %12 = vector.load %arg3[%c0_6, %c0_7] : memref<128x1xi32, #tpu.memory_space<vmem>>, vector<128x1xi32>
    %cst_8 = arith.constant 0.000000e+00 : f32
    %13 = vector.broadcast %cst_8 : f32 to vector<128x128xf32>
    %c0_i32 = arith.constant 0 : i32
    %14 = vector.broadcast %c0_i32 : i32 to vector<128x1xi32>
    %15 = arith.cmpi eq, %12, %14 : vector<128x1xi32>
    %16 = vector.extract_strided_slice %11 {offsets = [0, 0], sizes = [128, 128], strides = [1, 1]} : vector<128x512xf32> to vector<128x128xf32>
    %c0_9 = arith.constant 0 : index
    %c0_10 = arith.constant 0 : index
    %17 = vector.load %arg6[%c0_9, %c0_10] : memref<4x128xf32, #tpu.memory_space<vmem>>, vector<1x128xf32>
    %18 = vector.broadcast %17 : vector<1x128xf32> to vector<128x128xf32>
    %19 = arith.addf %16, %18 : vector<128x128xf32>
    %cst_11 = arith.constant 0.000000e+00 : f32
    %20 = vector.shape_cast %15 : vector<128x1xi1> to vector<128x1xi1>
    %21 = vector.broadcast %20 : vector<128x1xi1> to vector<128x128xi1>
    %22 = vector.broadcast %cst_11 : f32 to vector<128x128xf32>
    %23 = arith.select %21, %19, %22 : vector<128x128xi1>, vector<128x128xf32>
    %24 = arith.addf %13, %23 : vector<128x128xf32>
    %c1_i32 = arith.constant 1 : i32
    %25 = vector.broadcast %c1_i32 : i32 to vector<128x1xi32>
    %26 = arith.cmpi eq, %12, %25 : vector<128x1xi32>
    %27 = vector.extract_strided_slice %11 {offsets = [0, 128], sizes = [128, 128], strides = [1, 1]} : vector<128x512xf32> to vector<128x128xf32>
    %c1 = arith.constant 1 : index
    %c0_12 = arith.constant 0 : index
    %28 = vector.load %arg6[%c1, %c0_12] : memref<4x128xf32, #tpu.memory_space<vmem>>, vector<1x128xf32>
    %29 = vector.broadcast %28 : vector<1x128xf32> to vector<128x128xf32>
    %30 = arith.addf %27, %29 : vector<128x128xf32>
    %cst_13 = arith.constant 0.000000e+00 : f32
    %31 = vector.shape_cast %26 : vector<128x1xi1> to vector<128x1xi1>
    %32 = vector.broadcast %31 : vector<128x1xi1> to vector<128x128xi1>
    %33 = vector.broadcast %cst_13 : f32 to vector<128x128xf32>
    %34 = arith.select %32, %30, %33 : vector<128x128xi1>, vector<128x128xf32>
    %35 = arith.addf %24, %34 : vector<128x128xf32>
    %c2_i32 = arith.constant 2 : i32
    %36 = vector.broadcast %c2_i32 : i32 to vector<128x1xi32>
    %37 = arith.cmpi eq, %12, %36 : vector<128x1xi32>
    %38 = vector.extract_strided_slice %11 {offsets = [0, 256], sizes = [128, 128], strides = [1, 1]} : vector<128x512xf32> to vector<128x128xf32>
    %c2 = arith.constant 2 : index
    %c0_14 = arith.constant 0 : index
    %39 = vector.load %arg6[%c2, %c0_14] : memref<4x128xf32, #tpu.memory_space<vmem>>, vector<1x128xf32>
    %40 = vector.broadcast %39 : vector<1x128xf32> to vector<128x128xf32>
    %41 = arith.addf %38, %40 : vector<128x128xf32>
    %cst_15 = arith.constant 0.000000e+00 : f32
    %42 = vector.shape_cast %37 : vector<128x1xi1> to vector<128x1xi1>
    %43 = vector.broadcast %42 : vector<128x1xi1> to vector<128x128xi1>
    %44 = vector.broadcast %cst_15 : f32 to vector<128x128xf32>
    %45 = arith.select %43, %41, %44 : vector<128x128xi1>, vector<128x128xf32>
    %46 = arith.addf %35, %45 : vector<128x128xf32>
    %c3_i32 = arith.constant 3 : i32
    %47 = vector.broadcast %c3_i32 : i32 to vector<128x1xi32>
    %48 = arith.cmpi eq, %12, %47 : vector<128x1xi32>
    %49 = vector.extract_strided_slice %11 {offsets = [0, 384], sizes = [128, 128], strides = [1, 1]} : vector<128x512xf32> to vector<128x128xf32>
    %c3 = arith.constant 3 : index
    %c0_16 = arith.constant 0 : index
    %50 = vector.load %arg6[%c3, %c0_16] : memref<4x128xf32, #tpu.memory_space<vmem>>, vector<1x128xf32>
    %51 = vector.broadcast %50 : vector<1x128xf32> to vector<128x128xf32>
    %52 = arith.addf %49, %51 : vector<128x128xf32>
    %cst_17 = arith.constant 0.000000e+00 : f32
    %53 = vector.shape_cast %48 : vector<128x1xi1> to vector<128x1xi1>
    %54 = vector.broadcast %53 : vector<128x1xi1> to vector<128x128xi1>
    %55 = vector.broadcast %cst_17 : f32 to vector<128x128xf32>
    %56 = arith.select %54, %52, %55 : vector<128x128xi1>, vector<128x128xf32>
    %57 = arith.addf %46, %56 : vector<128x128xf32>
    %c0_18 = arith.constant 0 : index
    %c0_19 = arith.constant 0 : index
    %58 = vector.load %arg4[%c0_18, %c0_19] : memref<128x1xf32, #tpu.memory_space<vmem>>, vector<128x1xf32>
    %59 = vector.broadcast %58 : vector<128x1xf32> to vector<128x128xf32>
    %60 = arith.mulf %59, %57 : vector<128x128xf32>
    %61 = arith.truncf %60 : vector<128x128xf32> to vector<128x128xbf16>
    %c0_20 = arith.constant 0 : index
    %c0_21 = arith.constant 0 : index
    %62 = vector.load %arg7[%c0_20, %c0_21] : memref<128x128xbf16, #tpu.memory_space<vmem>>, vector<128x128xbf16>
    tpu.vector_store %arg7[%c0_20, %c0_21], %61 {strides = array<i32>} : memref<128x128xbf16, #tpu.memory_space<vmem>>, vector<128x128xbf16>,
    return
  }
  func.func @transform_0(%arg0: i32) -> (i32, i32) {
    %c0_i32 = arith.constant 0 : i32
    %c0_i32_0 = arith.constant 0 : i32
    %c0_i32_1 = arith.constant 0 : i32
    return %c0_i32, %c0_i32_0 : i32, i32
  }
  func.func @transform_1(%arg0: i32) -> (i32, i32) {
    %c0_i32 = arith.constant 0 : i32
    %c0_i32_0 = arith.constant 0 : i32
    return %arg0, %c0_i32 : i32, i32
  }
  func.func @transform_2(%arg0: i32) -> (i32, i32) {
    %c0_i32 = arith.constant 0 : i32
    %c0_i32_0 = arith.constant 0 : i32
    return %arg0, %c0_i32 : i32, i32
  }
  func.func @transform_3(%arg0: i32) -> (i32, i32) {
    %c0_i32 = arith.constant 0 : i32
    %c0_i32_0 = arith.constant 0 : i32
    return %arg0, %c0_i32 : i32, i32
  }
  func.func @transform_4(%arg0: i32) -> (i32, i32) {
    %c0_i32 = arith.constant 0 : i32
    %c0_i32_0 = arith.constant 0 : i32
    %c0_i32_1 = arith.constant 0 : i32
    return %c0_i32, %c0_i32_0 : i32, i32
  }
  func.func @transform_5(%arg0: i32) -> (i32, i32) {
    %c0_i32 = arith.constant 0 : i32
    %c0_i32_0 = arith.constant 0 : i32
    %c0_i32_1 = arith.constant 0 : i32
    return %c0_i32, %c0_i32_0 : i32, i32
  }
  func.func @transform_6(%arg0: i32) -> (i32, i32) {
    %c0_i32 = arith.constant 0 : i32
    %c0_i32_0 = arith.constant 0 : i32
    return %arg0, %c0_i32 : i32, i32
  }
}

</mosaic_0001>

<llo_original>
// kernel: tpu_custom_call.1
$region0: #{tpu_custom_call.1}
  #allocation0 [shape = 'u32[]', space=smem, size = 0x4, offset = 0x4, fixed_abs, tag = 'smem constant byte address 0x4 - core index']
  #allocation1 [shape = 'u32[72,128]{1,0:T(1,128)}', space=vmem, size = 0x9000, scoped, tag = 'internal scratch']
  %s0 = inlined_call_operand.vmem [shape: bf16[48,32], index: 0, kind: input, shape index: {}]
  %s1 = inlined_call_operand.vmem [shape: s32[384,1], index: 1, kind: input, shape index: {}]
  %s2 = inlined_call_operand.vmem [shape: s32[384,1], index: 2, kind: input, shape index: {}]
  %s3 = inlined_call_operand.vmem [shape: f32[384,1], index: 3, kind: input, shape index: {}]
  %s4 = inlined_call_operand.vmem [shape: bf16[32,512], index: 4, kind: input, shape index: {}]
  %s5 = inlined_call_operand.vmem [shape: f32[4,128], index: 5, kind: input, shape index: {}]
  %s6 = inlined_call_operand.hbm [shape: bf16[384,128], index: 6, kind: output, shape index: {}]
  %s7 = sld [smem:[#allocation0]]
  $region57: #{tpu_custom_call.1} parent=0
    _
  %s9 = ssub.s32 1, %s7
  %s10 = scalar_select 0, %s9, %s7
  $region1: #{tpu_custom_call.1} parent=0
    #allocation2 [shape = 'u8[65536]{0}', space=vmem, size = 0x10000, scoped, tag = 'output window, operand 0']
    #allocation3 [shape = 's32[2]{0}', space=sflag, size = 0x8, scoped, tag = 'scoped memory for tpu_custom_call.1']
    %11 = vsyncpa [#allocation3], 0
    %s12 = scalar_lea.sflag [#allocation3], 1
    %13 = vsyncpa %s12, 0
    loop: start=0, step=1, limit=5
    $region2: #{tpu_custom_call.1} parent=1 // loop_pre_header
      _
    $region3: #{tpu_custom_call.1} parent=1 // loop_header
      %s15 = sphi 0, %s19
      %p16 = scmp.ge.s32.totalorder %s15, 5
      %s23 = sphi 0, %s23
      %s25 = sphi 0, %s23
      %s26 = sphi 0, %s25
      %s40 = sphi 0, %s26
      %s46 = sphi 0, %s48
      %s49 = sphi 0, %s46
      %s50 = sphi 0, %s49
      %s66 = sphi 0, %s50
      %s72 = sphi 0, %s74
      %s75 = sphi 0, %s72
      %s76 = sphi 0, %s75
      %s92 = sphi 0, %s76
      %s98 = sphi 0, %s100
      %s101 = sphi 0, %s98
      %s102 = sphi 0, %s101
      %s118 = sphi 0, %s102
      %s122 = sphi 0, %s122
      %s124 = sphi 0, %s122
      %s125 = sphi 0, %s124
      %s139 = sphi 0, %s125
      %s143 = sphi 0, %s143
      %s145 = sphi 0, %s143
      %s146 = sphi 0, %s145
      %s160 = sphi 0, %s146
      %s166 = sphi 0, %s168
      %s169 = sphi 0, %s166
      %s170 = sphi 0, %s169
      %s186 = sphi 0, %s170
    $region4: #{tpu_custom_call.1} parent=1 // loop_header_branch
      %18 = sbr.rel (%p16) target = $region8
    $region5: #{tpu_custom_call.1} parent=1 // loop_body
      %s20 = ssub.s32 %s15, 1
      %s21 = ssub.s32 %s15, 2
      %s22 = sadd.s32 %s15, 1
      %s24 = sadd.s32 %s23, 1
      %p27 = scmp.eq.s32.totalorder %s15, 2
      %p28 = scmp.ne.s32.totalorder %s23, %s25
      %p29 = scmp.eq.s32.totalorder %s15, 0
      %p30 = por %p28, %p29
      %p31 = scmp.ne.s32.totalorder %s23, %s25
      %p32 = scmp.eq.s32.totalorder %s20, 2
      %p33 = por %p31, %p32
      %p34 = scmp.ne.s32.totalorder %s25, %s26
      %p35 = scmp.eq.s32.totalorder %s20, 0
      %p36 = por %p34, %p35
      %p37 = scmp.ne.s32.totalorder %s25, %s26
      %p38 = scmp.eq.s32.totalorder %s21, 2
      %p39 = por %p37, %p38
      %p41 = scmp.ne.s32.totalorder %s26, %s40
      %p42 = scmp.eq.s32.totalorder %s21, 0
      %p43 = por %p41, %p42
      %s44 = ssub.s32 %s15, %s22
      %p45 = scmp.eq.s32.totalorder %s44, 0
      %s47 = sadd.s32 %s46, 1
      %s48 = scalar_select %p45, %s46, %s47
      %p51 = pneg %p45
      %p52 = scmp.eq.s32.totalorder %s15, 2
      %p53 = por %p51, %p52
      %p54 = scmp.ne.s32.totalorder %s46, %s49
      %p55 = scmp.eq.s32.totalorder %s15, 0
      %p56 = por %p54, %p55
      %p57 = scmp.ne.s32.totalorder %s46, %s49
      %p58 = scmp.eq.s32.totalorder %s20, 2
      %p59 = por %p57, %p58
      %p60 = scmp.ne.s32.totalorder %s49, %s50
      %p61 = scmp.eq.s32.totalorder %s20, 0
      %p62 = por %p60, %p61
      %p63 = scmp.ne.s32.totalorder %s49, %s50
      %p64 = scmp.eq.s32.totalorder %s21, 2
      %p65 = por %p63, %p64
      %p67 = scmp.ne.s32.totalorder %s50, %s66
      %p68 = scmp.eq.s32.totalorder %s21, 0
      %p69 = por %p67, %p68
      %s70 = ssub.s32 %s15, %s22
      %p71 = scmp.eq.s32.totalorder %s70, 0
      %s73 = sadd.s32 %s72, 1
      %s74 = scalar_select %p71, %s72, %s73
      %p77 = pneg %p71
      %p78 = scmp.eq.s32.totalorder %s15, 2
      %p79 = por %p77, %p78
      %p80 = scmp.ne.s32.totalorder %s72, %s75
      %p81 = scmp.eq.s32.totalorder %s15, 0
      %p82 = por %p80, %p81
      %p83 = scmp.ne.s32.totalorder %s72, %s75
      %p84 = scmp.eq.s32.totalorder %s20, 2
      %p85 = por %p83, %p84
      %p86 = scmp.ne.s32.totalorder %s75, %s76
      %p87 = scmp.eq.s32.totalorder %s20, 0
      %p88 = por %p86, %p87
      %p89 = scmp.ne.s32.totalorder %s75, %s76
      %p90 = scmp.eq.s32.totalorder %s21, 2
      %p91 = por %p89, %p90
      %p93 = scmp.ne.s32.totalorder %s76, %s92
      %p94 = scmp.eq.s32.totalorder %s21, 0
      %p95 = por %p93, %p94
      %s96 = ssub.s32 %s15, %s22
      %p97 = scmp.eq.s32.totalorder %s96, 0
      %s99 = sadd.s32 %s98, 1
      %s100 = scalar_select %p97, %s98, %s99
      %p103 = pneg %p97
      %p104 = scmp.eq.s32.totalorder %s15, 2
      %p105 = por %p103, %p104
      %p106 = scmp.ne.s32.totalorder %s98, %s101
      %p107 = scmp.eq.s32.totalorder %s15, 0
      %p108 = por %p106, %p107
      %p109 = scmp.ne.s32.totalorder %s98, %s101
      %p110 = scmp.eq.s32.totalorder %s20, 2
      %p111 = por %p109, %p110
      %p112 = scmp.ne.s32.totalorder %s101, %s102
      %p113 = scmp.eq.s32.totalorder %s20, 0
      %p114 = por %p112, %p113
      %p115 = scmp.ne.s32.totalorder %s101, %s102
      %p116 = scmp.eq.s32.totalorder %s21, 2
      %p117 = por %p115, %p116
      %p119 = scmp.ne.s32.totalorder %s102, %s118
      %p120 = scmp.eq.s32.totalorder %s21, 0
      %p121 = por %p119, %p120
      %s123 = sadd.s32 %s122, 1
      %p126 = scmp.eq.s32.totalorder %s15, 2
      %p127 = scmp.ne.s32.totalorder %s122, %s124
      %p128 = scmp.eq.s32.totalorder %s15, 0
      %p129 = por %p127, %p128
      %p130 = scmp.ne.s32.totalorder %s122, %s124
      %p131 = scmp.eq.s32.totalorder %s20, 2
      %p132 = por %p130, %p131
      %p133 = scmp.ne.s32.totalorder %s124, %s125
      %p134 = scmp.eq.s32.totalorder %s20, 0
      %p135 = por %p133, %p134
      %p136 = scmp.ne.s32.totalorder %s124, %s125
      %p137 = scmp.eq.s32.totalorder %s21, 2
      %p138 = por %p136, %p137
      %p140 = scmp.ne.s32.totalorder %s125, %s139
      %p141 = scmp.eq.s32.totalorder %s21, 0
      %p142 = por %p140, %p141
      %s144 = sadd.s32 %s143, 1
      %p147 = scmp.eq.s32.totalorder %s15, 2
      %p148 = scmp.ne.s32.totalorder %s143, %s145
      %p149 = scmp.eq.s32.totalorder %s15, 0
      %p150 = por %p148, %p149
      %p151 = scmp.ne.s32.totalorder %s143, %s145
      %p152 = scmp.eq.s32.totalorder %s20, 2
      %p153 = por %p151, %p152
      %p154 = scmp.ne.s32.totalorder %s145, %s146
      %p155 = scmp.eq.s32.totalorder %s20, 0
      %p156 = por %p154, %p155
      %p157 = scmp.ne.s32.totalorder %s145, %s146
      %p158 = scmp.eq.s32.totalorder %s21, 2
      %p159 = por %p157, %p158
      %p161 = scmp.ne.s32.totalorder %s146, %s160
      %p162 = scmp.eq.s32.totalorder %s21, 0
      %p163 = por %p161, %p162
      %s164 = ssub.s32 %s15, %s22
      %p165 = scmp.eq.s32.totalorder %s164, 0
      %s167 = sadd.s32 %s166, 1
      %s168 = scalar_select %p165, %s166, %s167
      %p171 = pneg %p165
      %p172 = scmp.eq.s32.totalorder %s15, 2
      %p173 = por %p171, %p172
      %p174 = scmp.ne.s32.totalorder %s166, %s169
      %p175 = scmp.eq.s32.totalorder %s15, 0
      %p176 = por %p174, %p175
      %p177 = scmp.ne.s32.totalorder %s166, %s169
      %p178 = scmp.eq.s32.totalorder %s20, 2
      %p179 = por %p177, %p178
      %p180 = scmp.ne.s32.totalorder %s169, %s170
      %p181 = scmp.eq.s32.totalorder %s20, 0
      %p182 = por %p180, %p181
      %p183 = scmp.ne.s32.totalorder %s169, %s170
      %p184 = scmp.eq.s32.totalorder %s21, 2
      %p185 = por %p183, %p184
      %p187 = scmp.ne.s32.totalorder %s170, %s186
      %p188 = scmp.eq.s32.totalorder %s21, 0
      %p189 = por %p187, %p188
      %p190 = scmp.le.s32.totalorder 1, %s15
      %p191 = scmp.lt.s32.totalorder %s15, 4
      %p192 = pnand %p190, %p191
      %p193 = pneg %p192
      // Predicated region
      $region9: #{tpu_custom_call.1} parent=5 // pred_check
        _
      $region10: #{tpu_custom_call.1} parent=5 // pred_check_branch
        %195 = sbr.rel (%p192) target = $region12
      $region11: #{tpu_custom_call.1} parent=5 // pred_region
        %s196 = ssub.s32 %s15, 1
        // Predicated region
        $region13: #{tpu_custom_call.1} parent=11 // pred_check
          %p197 = pneg %p36
        $region14: #{tpu_custom_call.1} parent=11 // pred_check_branch
          %199 = sbr.rel (%p197) target = $region16
        $region15: #{tpu_custom_call.1} parent=11 // pred_region
          _
        $region16: #{tpu_custom_call.1} parent=11 // pred_fallthru
          _
        // Predicated region
        $region17: #{tpu_custom_call.1} parent=11 // pred_check
          %p200 = pneg %p135
        $region18: #{tpu_custom_call.1} parent=11 // pred_check_branch
          %202 = sbr.rel (%p200) target = $region20
        $region19: #{tpu_custom_call.1} parent=11 // pred_region
          _
        $region20: #{tpu_custom_call.1} parent=11 // pred_fallthru
          _
        // Predicated region
        $region21: #{tpu_custom_call.1} parent=11 // pred_check
          %p203 = pneg %p156
        $region22: #{tpu_custom_call.1} parent=11 // pred_check_branch
          %205 = sbr.rel (%p203) target = $region24
        $region23: #{tpu_custom_call.1} parent=11 // pred_region
          _
        $region24: #{tpu_custom_call.1} parent=11 // pred_fallthru
          _
      $region12: #{tpu_custom_call.1} parent=5 // pred_fallthru
        _
      %p206 = scmp.lt.s32.totalorder %s15, 3
      // Predicated region
      $region25: #{tpu_custom_call.1} parent=5 // pred_check
        %p207 = pneg %p206
      $region26: #{tpu_custom_call.1} parent=5 // pred_check_branch
        %209 = sbr.rel (%p207) target = $region28
      $region27: #{tpu_custom_call.1} parent=5 // pred_region
        // Predicated region
        $region29: #{tpu_custom_call.1} parent=27 // pred_check
          %p210 = pneg %p56
        $region30: #{tpu_custom_call.1} parent=27 // pred_check_branch
          %212 = sbr.rel (%p210) target = $region32
        $region31: #{tpu_custom_call.1} parent=27 // pred_region
          %s213 = smul.u32 16, %s15
          %p214 = scmp.lt.s32.totalorder %s213, 47
          %s215 = scalar_select %p214, %s213, 47
          %s216 = smul.addr %s215, 8
          %s217 = scalar_lea.vmem %s1, %s216
          %s218 = smul.u32 16, %s15
        $region32: #{tpu_custom_call.1} parent=27 // pred_fallthru
          _
        // Predicated region
        $region33: #{tpu_custom_call.1} parent=27 // pred_check
          %p219 = pneg %p82
        $region34: #{tpu_custom_call.1} parent=27 // pred_check_branch
          %221 = sbr.rel (%p219) target = $region36
        $region35: #{tpu_custom_call.1} parent=27 // pred_region
          %s222 = smul.u32 16, %s15
          %p223 = scmp.lt.s32.totalorder %s222, 47
          %s224 = scalar_select %p223, %s222, 47
          %s225 = smul.addr %s224, 8
          %s226 = scalar_lea.vmem %s2, %s225
          %s227 = smul.u32 16, %s15
        $region36: #{tpu_custom_call.1} parent=27 // pred_fallthru
          _
        // Predicated region
        $region37: #{tpu_custom_call.1} parent=27 // pred_check
          %p228 = pneg %p108
        $region38: #{tpu_custom_call.1} parent=27 // pred_check_branch
          %230 = sbr.rel (%p228) target = $region40
        $region39: #{tpu_custom_call.1} parent=27 // pred_region
          %s231 = smul.u32 16, %s15
          %p232 = scmp.lt.s32.totalorder %s231, 47
          %s233 = scalar_select %p232, %s231, 47
          %s234 = smul.addr %s233, 8
          %s235 = scalar_lea.vmem %s3, %s234
          %s236 = smul.u32 16, %s15
        $region40: #{tpu_custom_call.1} parent=27 // pred_fallthru
          _
      $region28: #{tpu_custom_call.1} parent=5 // pred_fallthru
        _
      %p237 = scmp.le.s32.totalorder 1, %s15
      %p238 = scmp.lt.s32.totalorder %s15, 4
      %p239 = pnand %p237, %p238
      %p240 = pneg %p239
      // Predicated region
      $region41: #{tpu_custom_call.1} parent=5 // pred_check
        _
      $region42: #{tpu_custom_call.1} parent=5 // pred_check_branch
        %242 = sbr.rel (%p239) target = $region44
      $region43: #{tpu_custom_call.1} parent=5 // pred_region
        %s243 = ssub.s32 %s15, 1
        %p244 = pneg %p36
        %p245 = pneg %p33
        %s246 = smul.u32 16, %s20
        %p247 = scmp.lt.s32.totalorder %s246, 47
        %s248 = scalar_select %p247, %s246, 47
        %s249 = smul.addr %s248, 8
        %s250 = scalar_lea.vmem %s1, %s249
        %p251 = pneg %p62
        %p252 = pneg %p59
        %s253 = smul.u32 16, %s20
        %p254 = scmp.lt.s32.totalorder %s253, 47
        %s255 = scalar_select %p254, %s253, 47
        %s256 = smul.addr %s255, 8
        %s257 = scalar_lea.vmem %s2, %s256
        %p258 = pneg %p88
        %p259 = pneg %p85
        %s260 = smul.u32 16, %s20
        %p261 = scmp.lt.s32.totalorder %s260, 47
        %s262 = scalar_select %p261, %s260, 47
        %s263 = smul.addr %s262, 8
        %s264 = scalar_lea.vmem %s3, %s263
        %p265 = pneg %p114
        %p266 = pneg %p111
        %p267 = pneg %p135
        %p268 = pneg %p132
        %p269 = pneg %p156
        %p270 = pneg %p153
        %p271 = pneg %p182
        %p272 = pneg %p179
        %s273 = sand.u32 %s169, 1
        %s274 = scalar_lea.sflag [#allocation3], %s273
        %s275 = sand.u32 %s169, 1
        %s276 = smul.addr %s275, 64
        %s277 = scalar_lea.vmem [#allocation2], %s276
        %s278 = smul.u32 16, %s20
        %p279 = scmp.lt.s32.totalorder %s278, 47
        %s280 = scalar_select %p279, %s278, 47
        %s281 = smul.addr %s280, 8
        %s282 = scalar_lea.vmem %s1, %s281
        %s283 = smul.u32 16, %s20
        %s284 = smul.u32 16, %s20
        %p285 = scmp.lt.s32.totalorder %s284, 47
        %s286 = scalar_select %p285, %s284, 47
        %s287 = smul.addr %s286, 8
        %s288 = scalar_lea.vmem %s2, %s287
        %s289 = smul.u32 16, %s20
        %s290 = smul.u32 16, %s20
        %p291 = scmp.lt.s32.totalorder %s290, 47
        %s292 = scalar_select %p291, %s290, 47
        %s293 = smul.addr %s292, 8
        %s294 = scalar_lea.vmem %s3, %s293
        %s295 = smul.u32 16, %s20
        %s296 = smul.u32 16, %s20
        %v298 = vld [vmem:[%s282] sm:$0xff]
        %v299 = vld [vmem:[%s282 + $0x8] sm:$0xff]
        %v300 = vld [vmem:[%s282 + $0x10] sm:$0xff]
        %v301 = vld [vmem:[%s282 + $0x18] sm:$0xff]
        %v302 = vld [vmem:[%s282 + $0x20] sm:$0xff]
        %v303 = vld [vmem:[%s282 + $0x28] sm:$0xff]
        %v304 = vld [vmem:[%s282 + $0x30] sm:$0xff]
        %v305 = vld [vmem:[%s282 + $0x38] sm:$0xff]
        %v306 = vld [vmem:[%s282 + $0x40] sm:$0xff]
        %v307 = vld [vmem:[%s282 + $0x48] sm:$0xff]
        %v308 = vld [vmem:[%s282 + $0x50] sm:$0xff]
        %v309 = vld [vmem:[%s282 + $0x58] sm:$0xff]
        %v310 = vld [vmem:[%s282 + $0x60] sm:$0xff]
        %v311 = vld [vmem:[%s282 + $0x68] sm:$0xff]
        %v312 = vld [vmem:[%s282 + $0x70] sm:$0xff]
        %v313 = vld [vmem:[%s282 + $0x78] sm:$0xff]
        %v314 = vlaneseq
        %v315 = vand.u32 %v314, 127
        %316 = vset.pattern.permute.xlu0 0
        %317 = vperm.xlu0 %316, %v298
        %v318 = vpop.permute.xlu0 %317
        %319 = vset.pattern.permute.xlu0 0
        %320 = vperm.xlu0 %319, %v299
        %v321 = vpop.permute.xlu0 %320
        %322 = vset.pattern.permute.xlu0 0
        %323 = vperm.xlu0 %322, %v300
        %v324 = vpop.permute.xlu0 %323
        %325 = vset.pattern.permute.xlu0 0
        %326 = vperm.xlu0 %325, %v301
        %v327 = vpop.permute.xlu0 %326
        %328 = vset.pattern.permute.xlu0 0
        %329 = vperm.xlu0 %328, %v302
        %v330 = vpop.permute.xlu0 %329
        %331 = vset.pattern.permute.xlu0 0
        %332 = vperm.xlu0 %331, %v303
        %v333 = vpop.permute.xlu0 %332
        %334 = vset.pattern.permute.xlu0 0
        %335 = vperm.xlu0 %334, %v304
        %v336 = vpop.permute.xlu0 %335
        %337 = vset.pattern.permute.xlu0 0
        %338 = vperm.xlu0 %337, %v305
        %v339 = vpop.permute.xlu0 %338
        %340 = vset.pattern.permute.xlu0 0
        %341 = vperm.xlu0 %340, %v306
        %v342 = vpop.permute.xlu0 %341
        %343 = vset.pattern.permute.xlu0 0
        %344 = vperm.xlu0 %343, %v307
        %v345 = vpop.permute.xlu0 %344
        %346 = vset.pattern.permute.xlu0 0
        %347 = vperm.xlu0 %346, %v308
        %v348 = vpop.permute.xlu0 %347
        %349 = vset.pattern.permute.xlu0 0
        %350 = vperm.xlu0 %349, %v309
        %v351 = vpop.permute.xlu0 %350
        %352 = vset.pattern.permute.xlu0 0
        %353 = vperm.xlu0 %352, %v310
        %v354 = vpop.permute.xlu0 %353
        %355 = vset.pattern.permute.xlu0 0
        %356 = vperm.xlu0 %355, %v311
        %v357 = vpop.permute.xlu0 %356
        %358 = vset.pattern.permute.xlu0 0
        %359 = vperm.xlu0 %358, %v312
        %v360 = vpop.permute.xlu0 %359
        %361 = vset.pattern.permute.xlu0 0
        %362 = vperm.xlu0 %361, %v313
        %v363 = vpop.permute.xlu0 %362
        %vm364 = vcmp.eq.s32.totalorder %v318, %v315
        %vm365 = vcmp.eq.s32.totalorder %v321, %v315
        %vm366 = vcmp.eq.s32.totalorder %v324, %v315
        %vm367 = vcmp.eq.s32.totalorder %v327, %v315
        %vm368 = vcmp.eq.s32.totalorder %v330, %v315
        %vm369 = vcmp.eq.s32.totalorder %v333, %v315
        %vm370 = vcmp.eq.s32.totalorder %v336, %v315
        %vm371 = vcmp.eq.s32.totalorder %v339, %v315
        %vm372 = vcmp.eq.s32.totalorder %v342, %v315
        %vm373 = vcmp.eq.s32.totalorder %v345, %v315
        %vm374 = vcmp.eq.s32.totalorder %v348, %v315
        %vm375 = vcmp.eq.s32.totalorder %v351, %v315
        %vm376 = vcmp.eq.s32.totalorder %v354, %v315
        %vm377 = vcmp.eq.s32.totalorder %v357, %v315
        %vm378 = vcmp.eq.s32.totalorder %v360, %v315
        %vm379 = vcmp.eq.s32.totalorder %v363, %v315
        %v380 = vsel %vm364, 1, 0
        %v381 = vsel %vm365, 1, 0
        %v382 = vsel %vm366, 1, 0
        %v383 = vsel %vm367, 1, 0
        %v384 = vsel %vm368, 1, 0
        %v385 = vsel %vm369, 1, 0
        %v386 = vsel %vm370, 1, 0
        %v387 = vsel %vm371, 1, 0
        %v388 = vsel %vm372, 1, 0
        %v389 = vsel %vm373, 1, 0
        %v390 = vsel %vm374, 1, 0
        %v391 = vsel %vm375, 1, 0
        %v392 = vsel %vm376, 1, 0
        %v393 = vsel %vm377, 1, 0
        %v394 = vsel %vm378, 1, 0
        %v395 = vsel %vm379, 1, 0
        %v396 = vcvt.s32.f32 %v380
        %v397 = vcvt.s32.f32 %v381
        %v398 = vcvt.s32.f32 %v382
        %v399 = vcvt.s32.f32 %v383
        %v400 = vcvt.s32.f32 %v384
        %v401 = vcvt.s32.f32 %v385
        %v402 = vcvt.s32.f32 %v386
        %v403 = vcvt.s32.f32 %v387
        %v404 = vcvt.s32.f32 %v388
        %v405 = vcvt.s32.f32 %v389
        %v406 = vcvt.s32.f32 %v390
        %v407 = vcvt.s32.f32 %v391
        %v408 = vcvt.s32.f32 %v392
        %v409 = vcvt.s32.f32 %v393
        %v410 = vcvt.s32.f32 %v394
        %v411 = vcvt.s32.f32 %v395
        %v412 = vpack.c.bf16 %v397, %v396
        %v413 = vpack.c.bf16 %v399, %v398
        %v414 = vpack.c.bf16 %v401, %v400
        %v415 = vpack.c.bf16 %v403, %v402
        %v416 = vpack.c.bf16 %v405, %v404
        %v417 = vpack.c.bf16 %v407, %v406
        %v418 = vpack.c.bf16 %v409, %v408
        %v419 = vpack.c.bf16 %v411, %v410
        %v420 = vld [vmem:[%s0] sm:$0xf]
        %v421 = vld [vmem:[%s0 + $0x4] sm:$0xf]
        %v422 = vld [vmem:[%s0 + $0x8] sm:$0xf]
        %v423 = vld [vmem:[%s0 + $0xc] sm:$0xf]
        %v424 = vld [vmem:[%s0 + $0x10] sm:$0xf]
        %v425 = vld [vmem:[%s0 + $0x14] sm:$0xf]
        %v432 = vunpack.c.l.b16 %v420
        %v433 = vunpack.c.l.b16 %v421
        %v434 = vunpack.c.l.b16 %v422
        %v435 = vunpack.c.l.b16 %v423
        %v436 = vunpack.c.l.b16 %v424
        %v437 = vunpack.c.l.b16 %v425
        %v438 = vpack.c.b16 %v433, %v432
        %v439 = vpack.c.b16 %v435, %v434
        %v440 = vpack.c.b16 %v437, %v436
        %vm444 = vcmask 392192
        %v446 = vsel %vm444, %v412, 0
        %v449 = vsel %vm444, %v413, 0
        %v452 = vsel %vm444, %v414, 0
        %v455 = vsel %vm444, %v415, 0
        %v458 = vsel %vm444, %v416, 0
        %v461 = vsel %vm444, %v417, 0
        %v464 = vsel %vm444, %v418, 0
        %v467 = vsel %vm444, %v419, 0
        %469 = vmatpush.bf16.msra.mxu0 0
        %470 = vmatpush.bf16.msra.mxu0 0
        %471 = vmatpush.bf16.msra.mxu0 0
        %472 = vmatpush.bf16.msra.mxu0 0
        %473 = vmatpush.bf16.msra.mxu0 0
        %474 = vmatpush.bf16.msra.mxu0 %v440
        %475 = vmatpush.bf16.msra.mxu0 %v439
        %476 = vmatpush.bf16.msra.mxu0 %v438
        %477 = vmatmul.bf16.gmra.mxu0 %v446
        %v478 = vpop.f32.mrf.mxu0
        %v479 = vadd.f32 0.0, %v478
        %v480 = vpop.f32.mrf.mxu0
        %v481 = vadd.f32 0.0, %v480
        %482 = vmatmul.bf16.gmra.mxu0 %v449
        %v483 = vpop.f32.mrf.mxu0
        %v484 = vadd.f32 0.0, %v483
        %v485 = vpop.f32.mrf.mxu0
        %v486 = vadd.f32 0.0, %v485
        %487 = vmatmul.bf16.gmra.mxu0 %v452
        %v488 = vpop.f32.mrf.mxu0
        %v489 = vadd.f32 0.0, %v488
        %v490 = vpop.f32.mrf.mxu0
        %v491 = vadd.f32 0.0, %v490
        %492 = vmatmul.bf16.gmra.mxu0 %v455
        %v493 = vpop.f32.mrf.mxu0
        %v494 = vadd.f32 0.0, %v493
        %v495 = vpop.f32.mrf.mxu0
        %v496 = vadd.f32 0.0, %v495
        %497 = vmatmul.bf16.gmra.mxu0 %v458
        %v498 = vpop.f32.mrf.mxu0
        %v499 = vadd.f32 0.0, %v498
        %v500 = vpop.f32.mrf.mxu0
        %v501 = vadd.f32 0.0, %v500
        %502 = vmatmul.bf16.gmra.mxu0 %v461
        %v503 = vpop.f32.mrf.mxu0
        %v504 = vadd.f32 0.0, %v503
        %v505 = vpop.f32.mrf.mxu0
        %v506 = vadd.f32 0.0, %v505
        %507 = vmatmul.bf16.gmra.mxu0 %v464
        %v508 = vpop.f32.mrf.mxu0
        %v509 = vadd.f32 0.0, %v508
        %v510 = vpop.f32.mrf.mxu0
        %v511 = vadd.f32 0.0, %v510
        %512 = vmatmul.bf16.gmra.mxu0 %v467
        %v513 = vpop.f32.mrf.mxu0
        %v514 = vadd.f32 0.0, %v513
        %v515 = vpop.f32.mrf.mxu0
        %v516 = vadd.f32 0.0, %v515
        %517 = vdwg.mxu0
        %v518 = vpack.c.bf16 %v481, %v479
        %v519 = vpack.c.bf16 %v486, %v484
        %v520 = vpack.c.bf16 %v491, %v489
        %v521 = vpack.c.bf16 %v496, %v494
        %v522 = vpack.c.bf16 %v501, %v499
        %v523 = vpack.c.bf16 %v506, %v504
        %v524 = vpack.c.bf16 %v511, %v509
        %v525 = vpack.c.bf16 %v516, %v514
        %v526 = vld [vmem:[%s4] sm:$0xff]
        %v527 = vld [vmem:[%s4 + $0x8] sm:$0xff]
        %v528 = vld [vmem:[%s4 + $0x10] sm:$0xff]
        %v529 = vld [vmem:[%s4 + $0x18] sm:$0xff]
        %v530 = vld [vmem:[%s4 + $0x20] sm:$0xff]
        %v531 = vld [vmem:[%s4 + $0x28] sm:$0xff]
        %v532 = vld [vmem:[%s4 + $0x30] sm:$0xff]
        %v533 = vld [vmem:[%s4 + $0x38] sm:$0xff]
        %v542 = vunpack.c.l.b16 %v526
        %v543 = vunpack.c.h.b16 %v526
        %v544 = vunpack.c.l.b16 %v527
        %v545 = vunpack.c.h.b16 %v527
        %v546 = vunpack.c.l.b16 %v528
        %v547 = vunpack.c.h.b16 %v528
        %v548 = vunpack.c.l.b16 %v529
        %v549 = vunpack.c.h.b16 %v529
        %v550 = vunpack.c.l.b16 %v530
        %v551 = vunpack.c.h.b16 %v530
        %v552 = vunpack.c.l.b16 %v531
        %v553 = vunpack.c.h.b16 %v531
        %v554 = vunpack.c.l.b16 %v532
        %v555 = vunpack.c.h.b16 %v532
        %v556 = vunpack.c.l.b16 %v533
        %v557 = vunpack.c.h.b16 %v533
        %v558 = vpack.c.b16 %v546, %v542
        %v559 = vpack.c.b16 %v547, %v543
        %v560 = vpack.c.b16 %v548, %v544
        %v561 = vpack.c.b16 %v549, %v545
        %v562 = vpack.c.b16 %v554, %v550
        %v563 = vpack.c.b16 %v555, %v551
        %v564 = vpack.c.b16 %v556, %v552
        %v565 = vpack.c.b16 %v557, %v553
        %vm574 = vcmask 261120
        %v576 = vsel %vm574, %v518, 0
        %v579 = vsel %vm574, %v519, 0
        %v582 = vsel %vm574, %v520, 0
        %v585 = vsel %vm574, %v521, 0
        %v588 = vsel %vm574, %v522, 0
        %v591 = vsel %vm574, %v523, 0
        %v594 = vsel %vm574, %v524, 0
        %v597 = vsel %vm574, %v525, 0
        %599 = vmatpush.bf16.msra.mxu0 0
        %600 = vmatpush.bf16.msra.mxu0 0
        %601 = vmatpush.bf16.msra.mxu0 0
        %602 = vmatpush.bf16.msra.mxu0 0
        %603 = vmatpush.bf16.msra.mxu0 0
        %604 = vmatpush.bf16.msra.mxu0 0
        %605 = vmatpush.bf16.msra.mxu0 %v562
        %606 = vmatpush.bf16.msra.mxu0 %v558
        %607 = vmatmul.bf16.gmra.mxu0 %v576
        %v608 = vpop.f32.mrf.mxu0
        %v609 = vadd.f32 0.0, %v608
        %v610 = vpop.f32.mrf.mxu0
        %v611 = vadd.f32 0.0, %v610
        %612 = vmatmul.bf16.gmra.mxu0 %v579
        %v613 = vpop.f32.mrf.mxu0
        %v614 = vadd.f32 0.0, %v613
        %v615 = vpop.f32.mrf.mxu0
        %v616 = vadd.f32 0.0, %v615
        %617 = vmatmul.bf16.gmra.mxu0 %v582
        %v618 = vpop.f32.mrf.mxu0
        %v619 = vadd.f32 0.0, %v618
        %v620 = vpop.f32.mrf.mxu0
        %v621 = vadd.f32 0.0, %v620
        %622 = vmatmul.bf16.gmra.mxu0 %v585
        %v623 = vpop.f32.mrf.mxu0
        %v624 = vadd.f32 0.0, %v623
        %v625 = vpop.f32.mrf.mxu0
        %v626 = vadd.f32 0.0, %v625
        %627 = vmatmul.bf16.gmra.mxu0 %v588
        %v628 = vpop.f32.mrf.mxu0
        %v629 = vadd.f32 0.0, %v628
        %v630 = vpop.f32.mrf.mxu0
        %v631 = vadd.f32 0.0, %v630
        %632 = vmatmul.bf16.gmra.mxu0 %v591
        %v633 = vpop.f32.mrf.mxu0
        %v634 = vadd.f32 0.0, %v633
        %v635 = vpop.f32.mrf.mxu0
        %v636 = vadd.f32 0.0, %v635
        %637 = vmatmul.bf16.gmra.mxu0 %v594
        %v638 = vpop.f32.mrf.mxu0
        %v639 = vadd.f32 0.0, %v638
        %v640 = vpop.f32.mrf.mxu0
        %v641 = vadd.f32 0.0, %v640
        %642 = vmatmul.bf16.gmra.mxu0 %v597
        %v643 = vpop.f32.mrf.mxu0
        %v644 = vadd.f32 0.0, %v643
        %v645 = vpop.f32.mrf.mxu0
        %v646 = vadd.f32 0.0, %v645
        %647 = vdwg.mxu0
        %648 = vmatpush.bf16.msra.mxu0 0
        %649 = vmatpush.bf16.msra.mxu0 0
        %650 = vmatpush.bf16.msra.mxu0 0
        %651 = vmatpush.bf16.msra.mxu0 0
        %652 = vmatpush.bf16.msra.mxu0 0
        %653 = vmatpush.bf16.msra.mxu0 0
        %654 = vmatpush.bf16.msra.mxu0 %v563
        %655 = vmatpush.bf16.msra.mxu0 %v559
        %656 = vmatmul.bf16.gmra.mxu0 %v576
        %v657 = vpop.f32.mrf.mxu0
        %v658 = vadd.f32 0.0, %v657
        %v659 = vpop.f32.mrf.mxu0
        %v660 = vadd.f32 0.0, %v659
        %661 = vmatmul.bf16.gmra.mxu0 %v579
        %v662 = vpop.f32.mrf.mxu0
        %v663 = vadd.f32 0.0, %v662
        %v664 = vpop.f32.mrf.mxu0
        %v665 = vadd.f32 0.0, %v664
        %666 = vmatmul.bf16.gmra.mxu0 %v582
        %v667 = vpop.f32.mrf.mxu0
        %v668 = vadd.f32 0.0, %v667
        %v669 = vpop.f32.mrf.mxu0
        %v670 = vadd.f32 0.0, %v669
        %671 = vmatmul.bf16.gmra.mxu0 %v585
        %v672 = vpop.f32.mrf.mxu0
        %v673 = vadd.f32 0.0, %v672
        %v674 = vpop.f32.mrf.mxu0
        %v675 = vadd.f32 0.0, %v674
        %676 = vmatmul.bf16.gmra.mxu0 %v588
        %v677 = vpop.f32.mrf.mxu0
        %v678 = vadd.f32 0.0, %v677
        %v679 = vpop.f32.mrf.mxu0
        %v680 = vadd.f32 0.0, %v679
        %681 = vmatmul.bf16.gmra.mxu0 %v591
        %v682 = vpop.f32.mrf.mxu0
        %v683 = vadd.f32 0.0, %v682
        %v684 = vpop.f32.mrf.mxu0
        %v685 = vadd.f32 0.0, %v684
        %686 = vmatmul.bf16.gmra.mxu0 %v594
        %v687 = vpop.f32.mrf.mxu0
        %v688 = vadd.f32 0.0, %v687
        %v689 = vpop.f32.mrf.mxu0
        %v690 = vadd.f32 0.0, %v689
        %691 = vmatmul.bf16.gmra.mxu0 %v597
        %v692 = vpop.f32.mrf.mxu0
        %v693 = vadd.f32 0.0, %v692
        %v694 = vpop.f32.mrf.mxu0
        %v695 = vadd.f32 0.0, %v694
        %696 = vdwg.mxu0
        %697 = vmatpush.bf16.msra.mxu0 0
        %698 = vmatpush.bf16.msra.mxu0 0
        %699 = vmatpush.bf16.msra.mxu0 0
        %700 = vmatpush.bf16.msra.mxu0 0
        %701 = vmatpush.bf16.msra.mxu0 0
        %702 = vmatpush.bf16.msra.mxu0 0
        %703 = vmatpush.bf16.msra.mxu0 %v564
        %704 = vmatpush.bf16.msra.mxu0 %v560
        %705 = vmatmul.bf16.gmra.mxu0 %v576
        %v706 = vpop.f32.mrf.mxu0
        %v707 = vadd.f32 0.0, %v706
        %v708 = vpop.f32.mrf.mxu0
        %v709 = vadd.f32 0.0, %v708
        %710 = vmatmul.bf16.gmra.mxu0 %v579
        %v711 = vpop.f32.mrf.mxu0
        %v712 = vadd.f32 0.0, %v711
        %v713 = vpop.f32.mrf.mxu0
        %v714 = vadd.f32 0.0, %v713
        %715 = vmatmul.bf16.gmra.mxu0 %v582
        %v716 = vpop.f32.mrf.mxu0
        %v717 = vadd.f32 0.0, %v716
        %v718 = vpop.f32.mrf.mxu0
        %v719 = vadd.f32 0.0, %v718
        %720 = vmatmul.bf16.gmra.mxu0 %v585
        %v721 = vpop.f32.mrf.mxu0
        %v722 = vadd.f32 0.0, %v721
        %v723 = vpop.f32.mrf.mxu0
        %v724 = vadd.f32 0.0, %v723
        %725 = vmatmul.bf16.gmra.mxu0 %v588
        %v726 = vpop.f32.mrf.mxu0
        %v727 = vadd.f32 0.0, %v726
        %v728 = vpop.f32.mrf.mxu0
        %v729 = vadd.f32 0.0, %v728
        %730 = vmatmul.bf16.gmra.mxu0 %v591
        %v731 = vpop.f32.mrf.mxu0
        %v732 = vadd.f32 0.0, %v731
        %v733 = vpop.f32.mrf.mxu0
        %v734 = vadd.f32 0.0, %v733
        %735 = vmatmul.bf16.gmra.mxu0 %v594
        %v736 = vpop.f32.mrf.mxu0
        %v737 = vadd.f32 0.0, %v736
        %v738 = vpop.f32.mrf.mxu0
        %v739 = vadd.f32 0.0, %v738
        %740 = vmatmul.bf16.gmra.mxu0 %v597
        %v741 = vpop.f32.mrf.mxu0
        %v742 = vadd.f32 0.0, %v741
        %v743 = vpop.f32.mrf.mxu0
        %v744 = vadd.f32 0.0, %v743
        %745 = vdwg.mxu0
        %746 = vmatpush.bf16.msra.mxu0 0
        %747 = vmatpush.bf16.msra.mxu0 0
        %748 = vmatpush.bf16.msra.mxu0 0
        %749 = vmatpush.bf16.msra.mxu0 0
        %750 = vmatpush.bf16.msra.mxu0 0
        %751 = vmatpush.bf16.msra.mxu0 0
        %752 = vmatpush.bf16.msra.mxu0 %v565
        %753 = vmatpush.bf16.msra.mxu0 %v561
        %754 = vmatmul.bf16.gmra.mxu0 %v576
        %v755 = vpop.f32.mrf.mxu0
        %v756 = vadd.f32 0.0, %v755
        %v757 = vpop.f32.mrf.mxu0
        %v758 = vadd.f32 0.0, %v757
        %759 = vmatmul.bf16.gmra.mxu0 %v579
        %v760 = vpop.f32.mrf.mxu0
        %v761 = vadd.f32 0.0, %v760
        %v762 = vpop.f32.mrf.mxu0
        %v763 = vadd.f32 0.0, %v762
        %764 = vmatmul.bf16.gmra.mxu0 %v582
        %v765 = vpop.f32.mrf.mxu0
        %v766 = vadd.f32 0.0, %v765
        %v767 = vpop.f32.mrf.mxu0
        %v768 = vadd.f32 0.0, %v767
        %769 = vmatmul.bf16.gmra.mxu0 %v585
        %v770 = vpop.f32.mrf.mxu0
        %v771 = vadd.f32 0.0, %v770
        %v772 = vpop.f32.mrf.mxu0
        %v773 = vadd.f32 0.0, %v772
        %774 = vmatmul.bf16.gmra.mxu0 %v588
        %v775 = vpop.f32.mrf.mxu0
        %v776 = vadd.f32 0.0, %v775
        %v777 = vpop.f32.mrf.mxu0
        %v778 = vadd.f32 0.0, %v777
        %779 = vmatmul.bf16.gmra.mxu0 %v591
        %v780 = vpop.f32.mrf.mxu0
        %v781 = vadd.f32 0.0, %v780
        %v782 = vpop.f32.mrf.mxu0
        %v783 = vadd.f32 0.0, %v782
        %784 = vmatmul.bf16.gmra.mxu0 %v594
        %v785 = vpop.f32.mrf.mxu0
        %v786 = vadd.f32 0.0, %v785
        %v787 = vpop.f32.mrf.mxu0
        %v788 = vadd.f32 0.0, %v787
        %789 = vmatmul.bf16.gmra.mxu0 %v597
        %v790 = vpop.f32.mrf.mxu0
        %v791 = vadd.f32 0.0, %v790
        %v792 = vpop.f32.mrf.mxu0
        %v793 = vadd.f32 0.0, %v792
        %794 = vdwg.mxu0
        %v795 = vld [vmem:[%s288] sm:$0xff]
        %v796 = vld [vmem:[%s288 + $0x8] sm:$0xff]
        %v797 = vld [vmem:[%s288 + $0x10] sm:$0xff]
        %v798 = vld [vmem:[%s288 + $0x18] sm:$0xff]
        %v799 = vld [vmem:[%s288 + $0x20] sm:$0xff]
        %v800 = vld [vmem:[%s288 + $0x28] sm:$0xff]
        %v801 = vld [vmem:[%s288 + $0x30] sm:$0xff]
        %v802 = vld [vmem:[%s288 + $0x38] sm:$0xff]
        %v803 = vld [vmem:[%s288 + $0x40] sm:$0xff]
        %v804 = vld [vmem:[%s288 + $0x48] sm:$0xff]
        %v805 = vld [vmem:[%s288 + $0x50] sm:$0xff]
        %v806 = vld [vmem:[%s288 + $0x58] sm:$0xff]
        %v807 = vld [vmem:[%s288 + $0x60] sm:$0xff]
        %v808 = vld [vmem:[%s288 + $0x68] sm:$0xff]
        %v809 = vld [vmem:[%s288 + $0x70] sm:$0xff]
        %v810 = vld [vmem:[%s288 + $0x78] sm:$0xff]
        %vm811 = vcmp.eq.s32.totalorder %v795, 0
        %vm812 = vcmp.eq.s32.totalorder %v796, 0
        %vm813 = vcmp.eq.s32.totalorder %v797, 0
        %vm814 = vcmp.eq.s32.totalorder %v798, 0
        %vm815 = vcmp.eq.s32.totalorder %v799, 0
        %vm816 = vcmp.eq.s32.totalorder %v800, 0
        %vm817 = vcmp.eq.s32.totalorder %v801, 0
        %vm818 = vcmp.eq.s32.totalorder %v802, 0
        %vm819 = vcmp.eq.s32.totalorder %v803, 0
        %vm820 = vcmp.eq.s32.totalorder %v804, 0
        %vm821 = vcmp.eq.s32.totalorder %v805, 0
        %vm822 = vcmp.eq.s32.totalorder %v806, 0
        %vm823 = vcmp.eq.s32.totalorder %v807, 0
        %vm824 = vcmp.eq.s32.totalorder %v808, 0
        %vm825 = vcmp.eq.s32.totalorder %v809, 0
        %vm826 = vcmp.eq.s32.totalorder %v810, 0
        %v827 = vld [vmem:[%s5] sm:$0x1]
        %v828 = vperm.slane %v827, 0
        %v829 = vadd.f32 %v609, %v828
        %v830 = vadd.f32 %v611, %v828
        %v831 = vadd.f32 %v614, %v828
        %v832 = vadd.f32 %v616, %v828
        %v833 = vadd.f32 %v619, %v828
        %v834 = vadd.f32 %v621, %v828
        %v835 = vadd.f32 %v624, %v828
        %v836 = vadd.f32 %v626, %v828
        %v837 = vadd.f32 %v629, %v828
        %v838 = vadd.f32 %v631, %v828
        %v839 = vadd.f32 %v634, %v828
        %v840 = vadd.f32 %v636, %v828
        %v841 = vadd.f32 %v639, %v828
        %v842 = vadd.f32 %v641, %v828
        %v843 = vadd.f32 %v644, %v828
        %v844 = vadd.f32 %v646, %v828
        %v845 = vsel %vm811, 1, 0
        %v846 = vsel %vm812, 1, 0
        %v847 = vsel %vm813, 1, 0
        %v848 = vsel %vm814, 1, 0
        %v849 = vsel %vm815, 1, 0
        %v850 = vsel %vm816, 1, 0
        %v851 = vsel %vm817, 1, 0
        %v852 = vsel %vm818, 1, 0
        %v853 = vsel %vm819, 1, 0
        %v854 = vsel %vm820, 1, 0
        %v855 = vsel %vm821, 1, 0
        %v856 = vsel %vm822, 1, 0
        %v857 = vsel %vm823, 1, 0
        %v858 = vsel %vm824, 1, 0
        %v859 = vsel %vm825, 1, 0
        %v860 = vsel %vm826, 1, 0
        %861 = vset.pattern.permute.xlu0 0
        %862 = vperm.xlu0 %861, %v845
        %v863 = vpop.permute.xlu0 %862
        %864 = vset.pattern.permute.xlu0 0
        %865 = vperm.xlu0 %864, %v846
        %v866 = vpop.permute.xlu0 %865
        %867 = vset.pattern.permute.xlu0 0
        %868 = vperm.xlu0 %867, %v847
        %v869 = vpop.permute.xlu0 %868
        %870 = vset.pattern.permute.xlu0 0
        %871 = vperm.xlu0 %870, %v848
        %v872 = vpop.permute.xlu0 %871
        %873 = vset.pattern.permute.xlu0 0
        %874 = vperm.xlu0 %873, %v849
        %v875 = vpop.permute.xlu0 %874
        %876 = vset.pattern.permute.xlu0 0
        %877 = vperm.xlu0 %876, %v850
        %v878 = vpop.permute.xlu0 %877
        %879 = vset.pattern.permute.xlu0 0
        %880 = vperm.xlu0 %879, %v851
        %v881 = vpop.permute.xlu0 %880
        %882 = vset.pattern.permute.xlu0 0
        %883 = vperm.xlu0 %882, %v852
        %v884 = vpop.permute.xlu0 %883
        %885 = vset.pattern.permute.xlu0 0
        %886 = vperm.xlu0 %885, %v853
        %v887 = vpop.permute.xlu0 %886
        %888 = vset.pattern.permute.xlu0 0
        %889 = vperm.xlu0 %888, %v854
        %v890 = vpop.permute.xlu0 %889
        %891 = vset.pattern.permute.xlu0 0
        %892 = vperm.xlu0 %891, %v855
        %v893 = vpop.permute.xlu0 %892
        %894 = vset.pattern.permute.xlu0 0
        %895 = vperm.xlu0 %894, %v856
        %v896 = vpop.permute.xlu0 %895
        %897 = vset.pattern.permute.xlu0 0
        %898 = vperm.xlu0 %897, %v857
        %v899 = vpop.permute.xlu0 %898
        %900 = vset.pattern.permute.xlu0 0
        %901 = vperm.xlu0 %900, %v858
        %v902 = vpop.permute.xlu0 %901
        %903 = vset.pattern.permute.xlu0 0
        %904 = vperm.xlu0 %903, %v859
        %v905 = vpop.permute.xlu0 %904
        %906 = vset.pattern.permute.xlu0 0
        %907 = vperm.xlu0 %906, %v860
        %v908 = vpop.permute.xlu0 %907
        %vm909 = vcmp.eq.s32.totalorder %v863, 1
        %vm910 = vcmp.eq.s32.totalorder %v866, 1
        %vm911 = vcmp.eq.s32.totalorder %v869, 1
        %vm912 = vcmp.eq.s32.totalorder %v872, 1
        %vm913 = vcmp.eq.s32.totalorder %v875, 1
        %vm914 = vcmp.eq.s32.totalorder %v878, 1
        %vm915 = vcmp.eq.s32.totalorder %v881, 1
        %vm916 = vcmp.eq.s32.totalorder %v884, 1
        %vm917 = vcmp.eq.s32.totalorder %v887, 1
        %vm918 = vcmp.eq.s32.totalorder %v890, 1
        %vm919 = vcmp.eq.s32.totalorder %v893, 1
        %vm920 = vcmp.eq.s32.totalorder %v896, 1
        %vm921 = vcmp.eq.s32.totalorder %v899, 1
        %vm922 = vcmp.eq.s32.totalorder %v902, 1
        %vm923 = vcmp.eq.s32.totalorder %v905, 1
        %vm924 = vcmp.eq.s32.totalorder %v908, 1
        %v925 = vsel %vm909, %v829, 0.0
        %v926 = vsel %vm910, %v830, 0.0
        %v927 = vsel %vm911, %v831, 0.0
        %v928 = vsel %vm912, %v832, 0.0
        %v929 = vsel %vm913, %v833, 0.0
        %v930 = vsel %vm914, %v834, 0.0
        %v931 = vsel %vm915, %v835, 0.0
        %v932 = vsel %vm916, %v836, 0.0
        %v933 = vsel %vm917, %v837, 0.0
        %v934 = vsel %vm918, %v838, 0.0
        %v935 = vsel %vm919, %v839, 0.0
        %v936 = vsel %vm920, %v840, 0.0
        %v937 = vsel %vm921, %v841, 0.0
        %v938 = vsel %vm922, %v842, 0.0
        %v939 = vsel %vm923, %v843, 0.0
        %v940 = vsel %vm924, %v844, 0.0
        %v941 = vadd.f32 %v925, 0.0
        %v942 = vadd.f32 %v926, 0.0
        %v943 = vadd.f32 %v927, 0.0
        %v944 = vadd.f32 %v928, 0.0
        %v945 = vadd.f32 %v929, 0.0
        %v946 = vadd.f32 %v930, 0.0
        %v947 = vadd.f32 %v931, 0.0
        %v948 = vadd.f32 %v932, 0.0
        %v949 = vadd.f32 %v933, 0.0
        %v950 = vadd.f32 %v934, 0.0
        %v951 = vadd.f32 %v935, 0.0
        %v952 = vadd.f32 %v936, 0.0
        %v953 = vadd.f32 %v937, 0.0
        %v954 = vadd.f32 %v938, 0.0
        %v955 = vadd.f32 %v939, 0.0
        %v956 = vadd.f32 %v940, 0.0
        %vm957 = vcmp.eq.s32.totalorder %v795, 1
        %vm958 = vcmp.eq.s32.totalorder %v796, 1
        %vm959 = vcmp.eq.s32.totalorder %v797, 1
        %vm960 = vcmp.eq.s32.totalorder %v798, 1
        %vm961 = vcmp.eq.s32.totalorder %v799, 1
        %vm962 = vcmp.eq.s32.totalorder %v800, 1
        %vm963 = vcmp.eq.s32.totalorder %v801, 1
        %vm964 = vcmp.eq.s32.totalorder %v802, 1
        %vm965 = vcmp.eq.s32.totalorder %v803, 1
        %vm966 = vcmp.eq.s32.totalorder %v804, 1
        %vm967 = vcmp.eq.s32.totalorder %v805, 1
        %vm968 = vcmp.eq.s32.totalorder %v806, 1
        %vm969 = vcmp.eq.s32.totalorder %v807, 1
        %vm970 = vcmp.eq.s32.totalorder %v808, 1
        %vm971 = vcmp.eq.s32.totalorder %v809, 1
        %vm972 = vcmp.eq.s32.totalorder %v810, 1
        %v973 = vld [vmem:[%s5 + $0x1] sm:$0x1]
        %v974 = vperm.slane %v973, 0
        %v975 = vadd.f32 %v658, %v974
        %v976 = vadd.f32 %v660, %v974
        %v977 = vadd.f32 %v663, %v974
        %v978 = vadd.f32 %v665, %v974
        %v979 = vadd.f32 %v668, %v974
        %v980 = vadd.f32 %v670, %v974
        %v981 = vadd.f32 %v673, %v974
        %v982 = vadd.f32 %v675, %v974
        %v983 = vadd.f32 %v678, %v974
        %v984 = vadd.f32 %v680, %v974
        %v985 = vadd.f32 %v683, %v974
        %v986 = vadd.f32 %v685, %v974
        %v987 = vadd.f32 %v688, %v974
        %v988 = vadd.f32 %v690, %v974
        %v989 = vadd.f32 %v693, %v974
        %v990 = vadd.f32 %v695, %v974
        %v991 = vsel %vm957, 1, 0
        %v992 = vsel %vm958, 1, 0
        %v993 = vsel %vm959, 1, 0
        %v994 = vsel %vm960, 1, 0
        %v995 = vsel %vm961, 1, 0
        %v996 = vsel %vm962, 1, 0
        %v997 = vsel %vm963, 1, 0
        %v998 = vsel %vm964, 1, 0
        %v999 = vsel %vm965, 1, 0
        %v1000 = vsel %vm966, 1, 0
        %v1001 = vsel %vm967, 1, 0
        %v1002 = vsel %vm968, 1, 0
        %v1003 = vsel %vm969, 1, 0
        %v1004 = vsel %vm970, 1, 0
        %v1005 = vsel %vm971, 1, 0
        %v1006 = vsel %vm972, 1, 0
        %1007 = vset.pattern.permute.xlu0 0
        %1008 = vperm.xlu0 %1007, %v991
        %v1009 = vpop.permute.xlu0 %1008
        %1010 = vset.pattern.permute.xlu0 0
        %1011 = vperm.xlu0 %1010, %v992
        %v1012 = vpop.permute.xlu0 %1011
        %1013 = vset.pattern.permute.xlu0 0
        %1014 = vperm.xlu0 %1013, %v993
        %v1015 = vpop.permute.xlu0 %1014
        %1016 = vset.pattern.permute.xlu0 0
        %1017 = vperm.xlu0 %1016, %v994
        %v1018 = vpop.permute.xlu0 %1017
        %1019 = vset.pattern.permute.xlu0 0
        %1020 = vperm.xlu0 %1019, %v995
        %v1021 = vpop.permute.xlu0 %1020
        %1022 = vset.pattern.permute.xlu0 0
        %1023 = vperm.xlu0 %1022, %v996
        %v1024 = vpop.permute.xlu0 %1023
        %1025 = vset.pattern.permute.xlu0 0
        %1026 = vperm.xlu0 %1025, %v997
        %v1027 = vpop.permute.xlu0 %1026
        %1028 = vset.pattern.permute.xlu0 0
        %1029 = vperm.xlu0 %1028, %v998
        %v1030 = vpop.permute.xlu0 %1029
        %1031 = vset.pattern.permute.xlu0 0
        %1032 = vperm.xlu0 %1031, %v999
        %v1033 = vpop.permute.xlu0 %1032
        %1034 = vset.pattern.permute.xlu0 0
        %1035 = vperm.xlu0 %1034, %v1000
        %v1036 = vpop.permute.xlu0 %1035
        %1037 = vset.pattern.permute.xlu0 0
        %1038 = vperm.xlu0 %1037, %v1001
        %v1039 = vpop.permute.xlu0 %1038
        %1040 = vset.pattern.permute.xlu0 0
        %1041 = vperm.xlu0 %1040, %v1002
        %v1042 = vpop.permute.xlu0 %1041
        %1043 = vset.pattern.permute.xlu0 0
        %1044 = vperm.xlu0 %1043, %v1003
        %v1045 = vpop.permute.xlu0 %1044
        %1046 = vset.pattern.permute.xlu0 0
        %1047 = vperm.xlu0 %1046, %v1004
        %v1048 = vpop.permute.xlu0 %1047
        %1049 = vset.pattern.permute.xlu0 0
        %1050 = vperm.xlu0 %1049, %v1005
        %v1051 = vpop.permute.xlu0 %1050
        %1052 = vset.pattern.permute.xlu0 0
        %1053 = vperm.xlu0 %1052, %v1006
        %v1054 = vpop.permute.xlu0 %1053
        %vm1055 = vcmp.eq.s32.totalorder %v1009, 1
        %vm1056 = vcmp.eq.s32.totalorder %v1012, 1
        %vm1057 = vcmp.eq.s32.totalorder %v1015, 1
        %vm1058 = vcmp.eq.s32.totalorder %v1018, 1
        %vm1059 = vcmp.eq.s32.totalorder %v1021, 1
        %vm1060 = vcmp.eq.s32.totalorder %v1024, 1
        %vm1061 = vcmp.eq.s32.totalorder %v1027, 1
        %vm1062 = vcmp.eq.s32.totalorder %v1030, 1
        %vm1063 = vcmp.eq.s32.totalorder %v1033, 1
        %vm1064 = vcmp.eq.s32.totalorder %v1036, 1
        %vm1065 = vcmp.eq.s32.totalorder %v1039, 1
        %vm1066 = vcmp.eq.s32.totalorder %v1042, 1
        %vm1067 = vcmp.eq.s32.totalorder %v1045, 1
        %vm1068 = vcmp.eq.s32.totalorder %v1048, 1
        %vm1069 = vcmp.eq.s32.totalorder %v1051, 1
        %vm1070 = vcmp.eq.s32.totalorder %v1054, 1
        %v1071 = vsel %vm1055, %v975, 0.0
        %v1072 = vsel %vm1056, %v976, 0.0
        %v1073 = vsel %vm1057, %v977, 0.0
        %v1074 = vsel %vm1058, %v978, 0.0
        %v1075 = vsel %vm1059, %v979, 0.0
        %v1076 = vsel %vm1060, %v980, 0.0
        %v1077 = vsel %vm1061, %v981, 0.0
        %v1078 = vsel %vm1062, %v982, 0.0
        %v1079 = vsel %vm1063, %v983, 0.0
        %v1080 = vsel %vm1064, %v984, 0.0
        %v1081 = vsel %vm1065, %v985, 0.0
        %v1082 = vsel %vm1066, %v986, 0.0
        %v1083 = vsel %vm1067, %v987, 0.0
        %v1084 = vsel %vm1068, %v988, 0.0
        %v1085 = vsel %vm1069, %v989, 0.0
        %v1086 = vsel %vm1070, %v990, 0.0
        %v1087 = vadd.f32 %v941, %v1071
        %v1088 = vadd.f32 %v942, %v1072
        %v1089 = vadd.f32 %v943, %v1073
        %v1090 = vadd.f32 %v944, %v1074
        %v1091 = vadd.f32 %v945, %v1075
        %v1092 = vadd.f32 %v946, %v1076
        %v1093 = vadd.f32 %v947, %v1077
        %v1094 = vadd.f32 %v948, %v1078
        %v1095 = vadd.f32 %v949, %v1079
        %v1096 = vadd.f32 %v950, %v1080
        %v1097 = vadd.f32 %v951, %v1081
        %v1098 = vadd.f32 %v952, %v1082
        %v1099 = vadd.f32 %v953, %v1083
        %v1100 = vadd.f32 %v954, %v1084
        %v1101 = vadd.f32 %v955, %v1085
        %v1102 = vadd.f32 %v956, %v1086
        %vm1103 = vcmp.eq.s32.totalorder %v795, 2
        %vm1104 = vcmp.eq.s32.totalorder %v796, 2
        %vm1105 = vcmp.eq.s32.totalorder %v797, 2
        %vm1106 = vcmp.eq.s32.totalorder %v798, 2
        %vm1107 = vcmp.eq.s32.totalorder %v799, 2
        %vm1108 = vcmp.eq.s32.totalorder %v800, 2
        %vm1109 = vcmp.eq.s32.totalorder %v801, 2
        %vm1110 = vcmp.eq.s32.totalorder %v802, 2
        %vm1111 = vcmp.eq.s32.totalorder %v803, 2
        %vm1112 = vcmp.eq.s32.totalorder %v804, 2
        %vm1113 = vcmp.eq.s32.totalorder %v805, 2
        %vm1114 = vcmp.eq.s32.totalorder %v806, 2
        %vm1115 = vcmp.eq.s32.totalorder %v807, 2
        %vm1116 = vcmp.eq.s32.totalorder %v808, 2
        %vm1117 = vcmp.eq.s32.totalorder %v809, 2
        %vm1118 = vcmp.eq.s32.totalorder %v810, 2
        %v1119 = vld [vmem:[%s5 + $0x2] sm:$0x1]
        %v1120 = vperm.slane %v1119, 0
        %v1121 = vadd.f32 %v707, %v1120
        %v1122 = vadd.f32 %v709, %v1120
        %v1123 = vadd.f32 %v712, %v1120
        %v1124 = vadd.f32 %v714, %v1120
        %v1125 = vadd.f32 %v717, %v1120
        %v1126 = vadd.f32 %v719, %v1120
        %v1127 = vadd.f32 %v722, %v1120
        %v1128 = vadd.f32 %v724, %v1120
        %v1129 = vadd.f32 %v727, %v1120
        %v1130 = vadd.f32 %v729, %v1120
        %v1131 = vadd.f32 %v732, %v1120
        %v1132 = vadd.f32 %v734, %v1120
        %v1133 = vadd.f32 %v737, %v1120
        %v1134 = vadd.f32 %v739, %v1120
        %v1135 = vadd.f32 %v742, %v1120
        %v1136 = vadd.f32 %v744, %v1120
        %v1137 = vsel %vm1103, 1, 0
        %v1138 = vsel %vm1104, 1, 0
        %v1139 = vsel %vm1105, 1, 0
        %v1140 = vsel %vm1106, 1, 0
        %v1141 = vsel %vm1107, 1, 0
        %v1142 = vsel %vm1108, 1, 0
        %v1143 = vsel %vm1109, 1, 0
        %v1144 = vsel %vm1110, 1, 0
        %v1145 = vsel %vm1111, 1, 0
        %v1146 = vsel %vm1112, 1, 0
        %v1147 = vsel %vm1113, 1, 0
        %v1148 = vsel %vm1114, 1, 0
        %v1149 = vsel %vm1115, 1, 0
        %v1150 = vsel %vm1116, 1, 0
        %v1151 = vsel %vm1117, 1, 0
        %v1152 = vsel %vm1118, 1, 0
        %1153 = vset.pattern.permute.xlu0 0
        %1154 = vperm.xlu0 %1153, %v1137
        %v1155 = vpop.permute.xlu0 %1154
        %1156 = vset.pattern.permute.xlu0 0
        %1157 = vperm.xlu0 %1156, %v1138
        %v1158 = vpop.permute.xlu0 %1157
        %1159 = vset.pattern.permute.xlu0 0
        %1160 = vperm.xlu0 %1159, %v1139
        %v1161 = vpop.permute.xlu0 %1160
        %1162 = vset.pattern.permute.xlu0 0
        %1163 = vperm.xlu0 %1162, %v1140
        %v1164 = vpop.permute.xlu0 %1163
        %1165 = vset.pattern.permute.xlu0 0
        %1166 = vperm.xlu0 %1165, %v1141
        %v1167 = vpop.permute.xlu0 %1166
        %1168 = vset.pattern.permute.xlu0 0
        %1169 = vperm.xlu0 %1168, %v1142
        %v1170 = vpop.permute.xlu0 %1169
        %1171 = vset.pattern.permute.xlu0 0
        %1172 = vperm.xlu0 %1171, %v1143
        %v1173 = vpop.permute.xlu0 %1172
        %1174 = vset.pattern.permute.xlu0 0
        %1175 = vperm.xlu0 %1174, %v1144
        %v1176 = vpop.permute.xlu0 %1175
        %1177 = vset.pattern.permute.xlu0 0
        %1178 = vperm.xlu0 %1177, %v1145
        %v1179 = vpop.permute.xlu0 %1178
        %1180 = vset.pattern.permute.xlu0 0
        %1181 = vperm.xlu0 %1180, %v1146
        %v1182 = vpop.permute.xlu0 %1181
        %1183 = vset.pattern.permute.xlu0 0
        %1184 = vperm.xlu0 %1183, %v1147
        %v1185 = vpop.permute.xlu0 %1184
        %1186 = vset.pattern.permute.xlu0 0
        %1187 = vperm.xlu0 %1186, %v1148
        %v1188 = vpop.permute.xlu0 %1187
        %1189 = vset.pattern.permute.xlu0 0
        %1190 = vperm.xlu0 %1189, %v1149
        %v1191 = vpop.permute.xlu0 %1190
        %1192 = vset.pattern.permute.xlu0 0
        %1193 = vperm.xlu0 %1192, %v1150
        %v1194 = vpop.permute.xlu0 %1193
        %1195 = vset.pattern.permute.xlu0 0
        %1196 = vperm.xlu0 %1195, %v1151
        %v1197 = vpop.permute.xlu0 %1196
        %1198 = vset.pattern.permute.xlu0 0
        %1199 = vperm.xlu0 %1198, %v1152
        %v1200 = vpop.permute.xlu0 %1199
        %vm1201 = vcmp.eq.s32.totalorder %v1155, 1
        %vm1202 = vcmp.eq.s32.totalorder %v1158, 1
        %vm1203 = vcmp.eq.s32.totalorder %v1161, 1
        %vm1204 = vcmp.eq.s32.totalorder %v1164, 1
        %vm1205 = vcmp.eq.s32.totalorder %v1167, 1
        %vm1206 = vcmp.eq.s32.totalorder %v1170, 1
        %vm1207 = vcmp.eq.s32.totalorder %v1173, 1
        %vm1208 = vcmp.eq.s32.totalorder %v1176, 1
        %vm1209 = vcmp.eq.s32.totalorder %v1179, 1
        %vm1210 = vcmp.eq.s32.totalorder %v1182, 1
        %vm1211 = vcmp.eq.s32.totalorder %v1185, 1
        %vm1212 = vcmp.eq.s32.totalorder %v1188, 1
        %vm1213 = vcmp.eq.s32.totalorder %v1191, 1
        %vm1214 = vcmp.eq.s32.totalorder %v1194, 1
        %vm1215 = vcmp.eq.s32.totalorder %v1197, 1
        %vm1216 = vcmp.eq.s32.totalorder %v1200, 1
        %v1217 = vsel %vm1201, %v1121, 0.0
        %v1218 = vsel %vm1202, %v1122, 0.0
        %v1219 = vsel %vm1203, %v1123, 0.0
        %v1220 = vsel %vm1204, %v1124, 0.0
        %v1221 = vsel %vm1205, %v1125, 0.0
        %v1222 = vsel %vm1206, %v1126, 0.0
        %v1223 = vsel %vm1207, %v1127, 0.0
        %v1224 = vsel %vm1208, %v1128, 0.0
        %v1225 = vsel %vm1209, %v1129, 0.0
        %v1226 = vsel %vm1210, %v1130, 0.0
        %v1227 = vsel %vm1211, %v1131, 0.0
        %v1228 = vsel %vm1212, %v1132, 0.0
        %v1229 = vsel %vm1213, %v1133, 0.0
        %v1230 = vsel %vm1214, %v1134, 0.0
        %v1231 = vsel %vm1215, %v1135, 0.0
        %v1232 = vsel %vm1216, %v1136, 0.0
        %v1233 = vadd.f32 %v1087, %v1217
        %v1234 = vadd.f32 %v1088, %v1218
        %v1235 = vadd.f32 %v1089, %v1219
        %v1236 = vadd.f32 %v1090, %v1220
        %v1237 = vadd.f32 %v1091, %v1221
        %v1238 = vadd.f32 %v1092, %v1222
        %v1239 = vadd.f32 %v1093, %v1223
        %v1240 = vadd.f32 %v1094, %v1224
        %v1241 = vadd.f32 %v1095, %v1225
        %v1242 = vadd.f32 %v1096, %v1226
        %v1243 = vadd.f32 %v1097, %v1227
        %v1244 = vadd.f32 %v1098, %v1228
        %v1245 = vadd.f32 %v1099, %v1229
        %v1246 = vadd.f32 %v1100, %v1230
        %v1247 = vadd.f32 %v1101, %v1231
        %v1248 = vadd.f32 %v1102, %v1232
        %vm1249 = vcmp.eq.s32.totalorder %v795, 3
        %vm1250 = vcmp.eq.s32.totalorder %v796, 3
        %vm1251 = vcmp.eq.s32.totalorder %v797, 3
        %vm1252 = vcmp.eq.s32.totalorder %v798, 3
        %vm1253 = vcmp.eq.s32.totalorder %v799, 3
        %vm1254 = vcmp.eq.s32.totalorder %v800, 3
        %vm1255 = vcmp.eq.s32.totalorder %v801, 3
        %vm1256 = vcmp.eq.s32.totalorder %v802, 3
        %vm1257 = vcmp.eq.s32.totalorder %v803, 3
        %vm1258 = vcmp.eq.s32.totalorder %v804, 3
        %vm1259 = vcmp.eq.s32.totalorder %v805, 3
        %vm1260 = vcmp.eq.s32.totalorder %v806, 3
        %vm1261 = vcmp.eq.s32.totalorder %v807, 3
        %vm1262 = vcmp.eq.s32.totalorder %v808, 3
        %vm1263 = vcmp.eq.s32.totalorder %v809, 3
        %vm1264 = vcmp.eq.s32.totalorder %v810, 3
        %v1265 = vld [vmem:[%s5 + $0x3] sm:$0x1]
        %v1266 = vperm.slane %v1265, 0
        %v1267 = vadd.f32 %v756, %v1266
        %v1268 = vadd.f32 %v758, %v1266
        %v1269 = vadd.f32 %v761, %v1266
        %v1270 = vadd.f32 %v763, %v1266
        %v1271 = vadd.f32 %v766, %v1266
        %v1272 = vadd.f32 %v768, %v1266
        %v1273 = vadd.f32 %v771, %v1266
        %v1274 = vadd.f32 %v773, %v1266
        %v1275 = vadd.f32 %v776, %v1266
        %v1276 = vadd.f32 %v778, %v1266
        %v1277 = vadd.f32 %v781, %v1266
        %v1278 = vadd.f32 %v783, %v1266
        %v1279 = vadd.f32 %v786, %v1266
        %v1280 = vadd.f32 %v788, %v1266
        %v1281 = vadd.f32 %v791, %v1266
        %v1282 = vadd.f32 %v793, %v1266
        %v1283 = vsel %vm1249, 1, 0
        %v1284 = vsel %vm1250, 1, 0
        %v1285 = vsel %vm1251, 1, 0
        %v1286 = vsel %vm1252, 1, 0
        %v1287 = vsel %vm1253, 1, 0
        %v1288 = vsel %vm1254, 1, 0
        %v1289 = vsel %vm1255, 1, 0
        %v1290 = vsel %vm1256, 1, 0
        %v1291 = vsel %vm1257, 1, 0
        %v1292 = vsel %vm1258, 1, 0
        %v1293 = vsel %vm1259, 1, 0
        %v1294 = vsel %vm1260, 1, 0
        %v1295 = vsel %vm1261, 1, 0
        %v1296 = vsel %vm1262, 1, 0
        %v1297 = vsel %vm1263, 1, 0
        %v1298 = vsel %vm1264, 1, 0
        %1299 = vset.pattern.permute.xlu0 0
        %1300 = vperm.xlu0 %1299, %v1283
        %v1301 = vpop.permute.xlu0 %1300
        %1302 = vset.pattern.permute.xlu0 0
        %1303 = vperm.xlu0 %1302, %v1284
        %v1304 = vpop.permute.xlu0 %1303
        %1305 = vset.pattern.permute.xlu0 0
        %1306 = vperm.xlu0 %1305, %v1285
        %v1307 = vpop.permute.xlu0 %1306
        %1308 = vset.pattern.permute.xlu0 0
        %1309 = vperm.xlu0 %1308, %v1286
        %v1310 = vpop.permute.xlu0 %1309
        %1311 = vset.pattern.permute.xlu0 0
        %1312 = vperm.xlu0 %1311, %v1287
        %v1313 = vpop.permute.xlu0 %1312
        %1314 = vset.pattern.permute.xlu0 0
        %1315 = vperm.xlu0 %1314, %v1288
        %v1316 = vpop.permute.xlu0 %1315
        %1317 = vset.pattern.permute.xlu0 0
        %1318 = vperm.xlu0 %1317, %v1289
        %v1319 = vpop.permute.xlu0 %1318
        %1320 = vset.pattern.permute.xlu0 0
        %1321 = vperm.xlu0 %1320, %v1290
        %v1322 = vpop.permute.xlu0 %1321
        %1323 = vset.pattern.permute.xlu0 0
        %1324 = vperm.xlu0 %1323, %v1291
        %v1325 = vpop.permute.xlu0 %1324
        %1326 = vset.pattern.permute.xlu0 0
        %1327 = vperm.xlu0 %1326, %v1292
        %v1328 = vpop.permute.xlu0 %1327
        %1329 = vset.pattern.permute.xlu0 0
        %1330 = vperm.xlu0 %1329, %v1293
        %v1331 = vpop.permute.xlu0 %1330
        %1332 = vset.pattern.permute.xlu0 0
        %1333 = vperm.xlu0 %1332, %v1294
        %v1334 = vpop.permute.xlu0 %1333
        %1335 = vset.pattern.permute.xlu0 0
        %1336 = vperm.xlu0 %1335, %v1295
        %v1337 = vpop.permute.xlu0 %1336
        %1338 = vset.pattern.permute.xlu0 0
        %1339 = vperm.xlu0 %1338, %v1296
        %v1340 = vpop.permute.xlu0 %1339
        %1341 = vset.pattern.permute.xlu0 0
        %1342 = vperm.xlu0 %1341, %v1297
        %v1343 = vpop.permute.xlu0 %1342
        %1344 = vset.pattern.permute.xlu0 0
        %1345 = vperm.xlu0 %1344, %v1298
        %v1346 = vpop.permute.xlu0 %1345
        %vm1347 = vcmp.eq.s32.totalorder %v1301, 1
        %vm1348 = vcmp.eq.s32.totalorder %v1304, 1
        %vm1349 = vcmp.eq.s32.totalorder %v1307, 1
        %vm1350 = vcmp.eq.s32.totalorder %v1310, 1
        %vm1351 = vcmp.eq.s32.totalorder %v1313, 1
        %vm1352 = vcmp.eq.s32.totalorder %v1316, 1
        %vm1353 = vcmp.eq.s32.totalorder %v1319, 1
        %vm1354 = vcmp.eq.s32.totalorder %v1322, 1
        %vm1355 = vcmp.eq.s32.totalorder %v1325, 1
        %vm1356 = vcmp.eq.s32.totalorder %v1328, 1
        %vm1357 = vcmp.eq.s32.totalorder %v1331, 1
        %vm1358 = vcmp.eq.s32.totalorder %v1334, 1
        %vm1359 = vcmp.eq.s32.totalorder %v1337, 1
        %vm1360 = vcmp.eq.s32.totalorder %v1340, 1
        %vm1361 = vcmp.eq.s32.totalorder %v1343, 1
        %vm1362 = vcmp.eq.s32.totalorder %v1346, 1
        %v1363 = vsel %vm1347, %v1267, 0.0
        %v1364 = vsel %vm1348, %v1268, 0.0
        %v1365 = vsel %vm1349, %v1269, 0.0
        %v1366 = vsel %vm1350, %v1270, 0.0
        %v1367 = vsel %vm1351, %v1271, 0.0
        %v1368 = vsel %vm1352, %v1272, 0.0
        %v1369 = vsel %vm1353, %v1273, 0.0
        %v1370 = vsel %vm1354, %v1274, 0.0
        %v1371 = vsel %vm1355, %v1275, 0.0
        %v1372 = vsel %vm1356, %v1276, 0.0
        %v1373 = vsel %vm1357, %v1277, 0.0
        %v1374 = vsel %vm1358, %v1278, 0.0
        %v1375 = vsel %vm1359, %v1279, 0.0
        %v1376 = vsel %vm1360, %v1280, 0.0
        %v1377 = vsel %vm1361, %v1281, 0.0
        %v1378 = vsel %vm1362, %v1282, 0.0
        %v1379 = vadd.f32 %v1233, %v1363
        %v1380 = vadd.f32 %v1234, %v1364
        %v1381 = vadd.f32 %v1235, %v1365
        %v1382 = vadd.f32 %v1236, %v1366
        %v1383 = vadd.f32 %v1237, %v1367
        %v1384 = vadd.f32 %v1238, %v1368
        %v1385 = vadd.f32 %v1239, %v1369
        %v1386 = vadd.f32 %v1240, %v1370
        %v1387 = vadd.f32 %v1241, %v1371
        %v1388 = vadd.f32 %v1242, %v1372
        %v1389 = vadd.f32 %v1243, %v1373
        %v1390 = vadd.f32 %v1244, %v1374
        %v1391 = vadd.f32 %v1245, %v1375
        %v1392 = vadd.f32 %v1246, %v1376
        %v1393 = vadd.f32 %v1247, %v1377
        %v1394 = vadd.f32 %v1248, %v1378
        %v1395 = vld [vmem:[%s294] sm:$0xff]
        %v1396 = vld [vmem:[%s294 + $0x8] sm:$0xff]
        %v1397 = vld [vmem:[%s294 + $0x10] sm:$0xff]
        %v1398 = vld [vmem:[%s294 + $0x18] sm:$0xff]
        %v1399 = vld [vmem:[%s294 + $0x20] sm:$0xff]
        %v1400 = vld [vmem:[%s294 + $0x28] sm:$0xff]
        %v1401 = vld [vmem:[%s294 + $0x30] sm:$0xff]
        %v1402 = vld [vmem:[%s294 + $0x38] sm:$0xff]
        %v1403 = vld [vmem:[%s294 + $0x40] sm:$0xff]
        %v1404 = vld [vmem:[%s294 + $0x48] sm:$0xff]
        %v1405 = vld [vmem:[%s294 + $0x50] sm:$0xff]
        %v1406 = vld [vmem:[%s294 + $0x58] sm:$0xff]
        %v1407 = vld [vmem:[%s294 + $0x60] sm:$0xff]
        %v1408 = vld [vmem:[%s294 + $0x68] sm:$0xff]
        %v1409 = vld [vmem:[%s294 + $0x70] sm:$0xff]
        %v1410 = vld [vmem:[%s294 + $0x78] sm:$0xff]
        %1412 = vset.pattern.permute.xlu0 0
        %1413 = vperm.xlu0 %1412, %v1395
        %v1414 = vpop.permute.xlu0 %1413
        %1417 = vset.pattern.permute.xlu0 0
        %1418 = vperm.xlu0 %1417, %v1396
        %v1419 = vpop.permute.xlu0 %1418
        %1422 = vset.pattern.permute.xlu0 0
        %1423 = vperm.xlu0 %1422, %v1397
        %v1424 = vpop.permute.xlu0 %1423
        %1427 = vset.pattern.permute.xlu0 0
        %1428 = vperm.xlu0 %1427, %v1398
        %v1429 = vpop.permute.xlu0 %1428
        %1432 = vset.pattern.permute.xlu0 0
        %1433 = vperm.xlu0 %1432, %v1399
        %v1434 = vpop.permute.xlu0 %1433
        %1437 = vset.pattern.permute.xlu0 0
        %1438 = vperm.xlu0 %1437, %v1400
        %v1439 = vpop.permute.xlu0 %1438
        %1442 = vset.pattern.permute.xlu0 0
        %1443 = vperm.xlu0 %1442, %v1401
        %v1444 = vpop.permute.xlu0 %1443
        %1447 = vset.pattern.permute.xlu0 0
        %1448 = vperm.xlu0 %1447, %v1402
        %v1449 = vpop.permute.xlu0 %1448
        %1452 = vset.pattern.permute.xlu0 0
        %1453 = vperm.xlu0 %1452, %v1403
        %v1454 = vpop.permute.xlu0 %1453
        %1457 = vset.pattern.permute.xlu0 0
        %1458 = vperm.xlu0 %1457, %v1404
        %v1459 = vpop.permute.xlu0 %1458
        %1462 = vset.pattern.permute.xlu0 0
        %1463 = vperm.xlu0 %1462, %v1405
        %v1464 = vpop.permute.xlu0 %1463
        %1467 = vset.pattern.permute.xlu0 0
        %1468 = vperm.xlu0 %1467, %v1406
        %v1469 = vpop.permute.xlu0 %1468
        %1472 = vset.pattern.permute.xlu0 0
        %1473 = vperm.xlu0 %1472, %v1407
        %v1474 = vpop.permute.xlu0 %1473
        %1477 = vset.pattern.permute.xlu0 0
        %1478 = vperm.xlu0 %1477, %v1408
        %v1479 = vpop.permute.xlu0 %1478
        %1482 = vset.pattern.permute.xlu0 0
        %1483 = vperm.xlu0 %1482, %v1409
        %v1484 = vpop.permute.xlu0 %1483
        %1487 = vset.pattern.permute.xlu0 0
        %1488 = vperm.xlu0 %1487, %v1410
        %v1489 = vpop.permute.xlu0 %1488
        %v1491 = vmul.f32 %v1414, %v1379
        %v1492 = vmul.f32 %v1419, %v1380
        %v1493 = vmul.f32 %v1424, %v1381
        %v1494 = vmul.f32 %v1429, %v1382
        %v1495 = vmul.f32 %v1434, %v1383
        %v1496 = vmul.f32 %v1439, %v1384
        %v1497 = vmul.f32 %v1444, %v1385
        %v1498 = vmul.f32 %v1449, %v1386
        %v1499 = vmul.f32 %v1454, %v1387
        %v1500 = vmul.f32 %v1459, %v1388
        %v1501 = vmul.f32 %v1464, %v1389
        %v1502 = vmul.f32 %v1469, %v1390
        %v1503 = vmul.f32 %v1474, %v1391
        %v1504 = vmul.f32 %v1479, %v1392
        %v1505 = vmul.f32 %v1484, %v1393
        %v1506 = vmul.f32 %v1489, %v1394
        %v1507 = vpack.c.bf16 %v1491, %v1491
        %v1508 = vpack.c.bf16 %v1492, %v1492
        %v1509 = vpack.c.bf16 %v1493, %v1493
        %v1510 = vpack.c.bf16 %v1494, %v1494
        %v1511 = vpack.c.bf16 %v1495, %v1495
        %v1512 = vpack.c.bf16 %v1496, %v1496
        %v1513 = vpack.c.bf16 %v1497, %v1497
        %v1514 = vpack.c.bf16 %v1498, %v1498
        %v1515 = vpack.c.bf16 %v1499, %v1499
        %v1516 = vpack.c.bf16 %v1500, %v1500
        %v1517 = vpack.c.bf16 %v1501, %v1501
        %v1518 = vpack.c.bf16 %v1502, %v1502
        %v1519 = vpack.c.bf16 %v1503, %v1503
        %v1520 = vpack.c.bf16 %v1504, %v1504
        %v1521 = vpack.c.bf16 %v1505, %v1505
        %v1522 = vpack.c.bf16 %v1506, %v1506
        %1523 = vst [vmem:[%s277] sm:$0xf] %v1507
        %1524 = vst [vmem:[%s277 + $0x4] sm:$0xf] %v1508
        %1525 = vst [vmem:[%s277 + $0x8] sm:$0xf] %v1509
        %1526 = vst [vmem:[%s277 + $0xc] sm:$0xf] %v1510
        %1527 = vst [vmem:[%s277 + $0x10] sm:$0xf] %v1511
        %1528 = vst [vmem:[%s277 + $0x14] sm:$0xf] %v1512
        %1529 = vst [vmem:[%s277 + $0x18] sm:$0xf] %v1513
        %1530 = vst [vmem:[%s277 + $0x1c] sm:$0xf] %v1514
        %1531 = vst [vmem:[%s277 + $0x20] sm:$0xf] %v1515
        %1532 = vst [vmem:[%s277 + $0x24] sm:$0xf] %v1516
        %1533 = vst [vmem:[%s277 + $0x28] sm:$0xf] %v1517
        %1534 = vst [vmem:[%s277 + $0x2c] sm:$0xf] %v1518
        %1535 = vst [vmem:[%s277 + $0x30] sm:$0xf] %v1519
        %1536 = vst [vmem:[%s277 + $0x34] sm:$0xf] %v1520
        %1537 = vst [vmem:[%s277 + $0x38] sm:$0xf] %v1521
        %1538 = vst [vmem:[%s277 + $0x3c] sm:$0xf] %v1522
        %s1539 = sand.u32 %s169, 1
        %s1540 = scalar_lea.sflag [#allocation3], %s1539
        %s1541 = sand.u32 %s169, 1
        %s1542 = smul.addr %s1541, 64
        %s1543 = scalar_lea.vmem [#allocation2], %s1542
        // Predicated region
        $region45: #{tpu_custom_call.1} parent=43 // pred_check
          %p1544 = pneg %p179
        $region46: #{tpu_custom_call.1} parent=43 // pred_check_branch
          %1546 = sbr.rel (%p1544) target = $region48
        $region47: #{tpu_custom_call.1} parent=43 // pred_region
          %s1547 = smul.u32 16, %s20
          %1549 = vsyncadd %s1540, 0
          %s1550 = smul.addr %s1547, 4
          %s1551 = scalar_lea.hbm %s6, %s1550
          %s1552 = sshll.u32 %s1543, 4
          %s1553 = int_to_ptr.vmem [resolvable:$true] %s1552
          %s1554 = sshll.u32 %s1551, 4
          %s1555 = int_to_ptr.hbm [resolvable:$true] %s1554
          %1560 = dma.vmem_to_hbm [thread:$0]  %s1553, 1024, %s1555, %s1540, 64, 64, 4
        $region48: #{tpu_custom_call.1} parent=43 // pred_fallthru
          _
      $region44: #{tpu_custom_call.1} parent=5 // pred_fallthru
        _
      %p1561 = scmp.le.s32.totalorder 2, %s15
      // Predicated region
      $region49: #{tpu_custom_call.1} parent=5 // pred_check
        %p1562 = pneg %p1561
      $region50: #{tpu_custom_call.1} parent=5 // pred_check_branch
        %1564 = sbr.rel (%p1562) target = $region52
      $region51: #{tpu_custom_call.1} parent=5 // pred_region
        %s1565 = ssub.s32 %s15, 2
        // Predicated region
        $region53: #{tpu_custom_call.1} parent=51 // pred_check
          %p1566 = pneg %p185
        $region54: #{tpu_custom_call.1} parent=51 // pred_check_branch
          %1568 = sbr.rel (%p1566) target = $region56
        $region55: #{tpu_custom_call.1} parent=51 // pred_region
          %s1569 = sand.u32 %s170, 1
          %s1570 = scalar_lea.sflag [#allocation3], %s1569
          %s1571 = sand.u32 %s170, 1
          %s1572 = smul.addr %s1571, 64
          %s1573 = scalar_lea.vmem [#allocation2], %s1572
          %1575 = dma.done %s1570, 1024
        $region56: #{tpu_custom_call.1} parent=51 // pred_fallthru
          _
      $region52: #{tpu_custom_call.1} parent=5 // pred_fallthru
        _
    $region6: #{tpu_custom_call.1} parent=1 // loop_footer
      %s19 = sadd.s32 1, %s15
    $region7: #{tpu_custom_call.1} parent=1 // loop_footer_branch
      %14 = sbr.rel target = $region3
    $region8: #{tpu_custom_call.1} parent=1 // loop_exit
      _
    %1576 = vsyncpa [#allocation3], 1
    %s1577 = scalar_lea.sflag [#allocation3], 1
    %1578 = vsyncpa %s1577, 1

</llo_original>
